<compile_context>
chip_gen: v6e
topology: v6e:2x2x1
jax: 0.10.0
libtpu: 0.0.40
codegen_flags: <defaults>
</compile_context>

<pallas_src>
import functools

import jax
import jax.numpy as jnp
from jax import lax
from jax.experimental import pallas as pl
from jax.experimental.pallas import tpu as pltpu


def _attention_kernel(x_ref, wqkv_ref, bqkv_ref, wo_ref, bo_ref, o_ref,
                      *, num_heads, head_dim, embed_dim):
    E = embed_dim

    # One grid step == one batch element. x block: (1, N, E).
    x_bf16 = x_ref[0].astype(jnp.bfloat16)                        # (N, E)

    # Fused QKV projection: single (N, E) x (E, 3E) MXU pass, f32 accumulate.
    # The attention scale is already folded into the Q columns of wqkv/bqkv.
    qkv = jnp.dot(x_bf16, wqkv_ref[...],
                  preferred_element_type=jnp.float32) + bqkv_ref[...]  # (N, 3E)

    qkv_bf16 = qkv.astype(jnp.bfloat16)                           # single cast
    q = qkv_bf16[:, :E]                                           # (N, E) scaled
    k = qkv_bf16[:, E:2 * E]
    v = qkv_bf16[:, 2 * E:]

    wo = wo_ref[...]                                              # (E, E) bf16

    acc = None
    # Static per-head loop (num_heads is small); all slice offsets are static.
    for h in range(num_heads):
        lo = h * head_dim
        hi = lo + head_dim
        qh = q[:, lo:hi]                                          # (N, Dh) bf16
        kh = k[:, lo:hi]
        vh = v[:, lo:hi]

        # q @ k^T without materializing a transpose: contract both on dim 1.
        scores = lax.dot_general(qh, kh, (((1,), (1,)), ((), ())),
                                 preferred_element_type=jnp.float32)   # (N, N)
        scores = scores - jnp.max(scores, axis=-1, keepdims=True)
        probs = jnp.exp(scores)
        probs = probs * pl.reciprocal(
            jnp.sum(probs, axis=-1, keepdims=True), approx=True)

        head_out = jnp.dot(probs.astype(jnp.bfloat16), vh,
                           preferred_element_type=jnp.float32)          # (N, Dh)

        # Fold the output projection into the head loop: no lane-dim concat.
        term = jnp.dot(head_out.astype(jnp.bfloat16), wo[lo:hi, :],
                       preferred_element_type=jnp.float32)              # (N, E)
        acc = term if acc is None else acc + term

    o_ref[0] = (acc + bo_ref[...]).astype(o_ref.dtype)


def attention_forward(x, params, *, num_heads):
    """x: (B, N, E) float32. params: dict of pre-transposed weights/biases."""
    B, N, E = x.shape
    head_dim = E // num_heads
    scale = jnp.float32(head_dim) ** jnp.float32(-0.5)

    # Host-side fusion of the three projection weights/biases; the attention
    # scale is folded into the Q portion (x@(s*Wq)+s*bq == s*(x@Wq+bq) == Q*s).
    wqkv = jnp.concatenate(
        [params["wq"] * scale, params["wk"], params["wv"]],
        axis=1).astype(jnp.bfloat16)                                    # (E, 3E)
    bqkv = jnp.concatenate(
        [params["bq"] * scale, params["bk"], params["bv"]]
    ).reshape(1, 3 * E).astype(jnp.float32)                             # (1, 3E)
    wo = params["wo"].astype(jnp.bfloat16)                              # (E, E)
    bo = params["bo"].reshape(1, E).astype(jnp.float32)                 # (1, E)

    kernel = functools.partial(_attention_kernel, num_heads=num_heads,
                               head_dim=head_dim, embed_dim=E)

    return pl.pallas_call(
        kernel,
        out_shape=jax.ShapeDtypeStruct((B, N, E), x.dtype),
        grid_spec=pltpu.PrefetchScalarGridSpec(
            num_scalar_prefetch=0,
            grid=(B,),
            in_specs=[
                pl.BlockSpec((1, N, E), lambda b: (b, 0, 0)),      # x
                pl.BlockSpec((E, 3 * E), lambda b: (0, 0)),        # wqkv (bf16)
                pl.BlockSpec((1, 3 * E), lambda b: (0, 0)),        # bqkv (f32)
                pl.BlockSpec((E, E), lambda b: (0, 0)),            # wo   (bf16)
                pl.BlockSpec((1, E), lambda b: (0, 0)),            # bo   (f32)
            ],
            out_specs=pl.BlockSpec((1, N, E), lambda b: (b, 0, 0)),
        ),
        compiler_params=pltpu.CompilerParams(
            dimension_semantics=("parallel",),
            vmem_limit_bytes=32 * 1024 * 1024),
    )(x, wqkv, bqkv, wo, bo)


def attention_reference(x, params, *, num_heads):
    """Pure-JAX f32 reference mirroring the PyTorch forward exactly."""
    B, N, E = x.shape
    head_dim = E // num_heads
    scale = head_dim ** (-0.5)

    q = x @ params["wq"] + params["bq"]
    k = x @ params["wk"] + params["bk"]
    v = x @ params["wv"] + params["bv"]

    def split_heads(t):
        return t.reshape(B, N, num_heads, head_dim).transpose(0, 2, 1, 3)

    q, k, v = split_heads(q) * scale, split_heads(k), split_heads(v)
    scores = jnp.einsum("bhqd,bhkd->bhqk", q, k)
    weights = jax.nn.softmax(scores, axis=-1)
    out = jnp.einsum("bhqk,bhkd->bhqd", weights, v)
    out = out.transpose(0, 2, 1, 3).reshape(B, N, E)
    return out @ params["wo"] + params["bo"]


def init_params(key, embed_dim):
    keys = jax.random.split(key, 8)

    def w(k):
        return (jax.random.normal(k, (embed_dim, embed_dim), jnp.float32)
                / jnp.sqrt(embed_dim))

    def b(k):
        return jax.random.normal(k, (embed_dim,), jnp.float32) * 0.02

    return {
        "wq": w(keys[0]), "bq": b(keys[1]),
        "wk": w(keys[2]), "bk": b(keys[3]),
        "wv": w(keys[4]), "bv": b(keys[5]),
        "wo": w(keys[6]), "bo": b(keys[7]),
    }


if __name__ == "__main__":
    # Module config: embed_dim=128, num_heads=4, N = (32/4)^2 + 1 = 65 tokens.
    # Small batch of 2. E=128 keeps the output last dim lane-dense.
    B, N, E, H = 2, 65, 128, 4

    key = jax.random.PRNGKey(0)
    key_x, key_p = jax.random.split(key)
    x = jax.random.normal(key_x, (B, N, E), jnp.float32)
    params = init_params(key_p, E)

    out = attention_forward(x, params, num_heads=H)
    out = jax.block_until_ready(out)

    ref = attention_reference(x, params, num_heads=H)
    assert out.shape == (B, N, E)
    # bf16 MXU operands (f32 accumulation) + approx softmax reciprocal ->
    # compare against the pure-f32 reference at bf16-level tolerance.
    assert jnp.allclose(out, ref, atol=5e-2, rtol=5e-2), (
        f"max abs err {jnp.max(jnp.abs(out - ref))}")

    print("KERNEL_OK")
</pallas_src>

<mosaic_0001>
module attributes {stable_mosaic.version = 11 : i64} {
  func.func @_attention_kernel(%arg0: i32, %arg1: memref<1x65x128xf32, #tpu.memory_space<vmem>>, %arg2: memref<128x384xbf16, #tpu.memory_space<vmem>>, %arg3: memref<1x384xf32, #tpu.memory_space<vmem>>, %arg4: memref<128x128xbf16, #tpu.memory_space<vmem>>, %arg5: memref<1x128xf32, #tpu.memory_space<vmem>>, %arg6: memref<1x65x128xf32, #tpu.memory_space<vmem>>) attributes {dimension_semantics = [#tpu.dimension_semantics<parallel>], iteration_bounds = array<i64: 2>, scalar_prefetch = 0 : i64, scratch_operands = 0 : i64, tpu.core_type = #tpu.core_type<tc>, window_params = [{transform_indices = @transform_0, window_bounds = array<i64: 1, 65, 128>}, {pipeline_mode = #tpu.pipeline_mode<synchronous>, transform_indices = @transform_1, window_bounds = array<i64: 128, 384>}, {pipeline_mode = #tpu.pipeline_mode<synchronous>, transform_indices = @transform_2, window_bounds = array<i64: 1, 384>}, {pipeline_mode = #tpu.pipeline_mode<synchronous>, transform_indices = @transform_3, window_bounds = array<i64: 128, 128>}, {pipeline_mode = #tpu.pipeline_mode<synchronous>, transform_indices = @transform_4, window_bounds = array<i64: 1, 128>}, {transform_indices = @transform_5, window_bounds = array<i64: 1, 65, 128>}]} {
    %c0 = arith.constant 0 : index
    %c0_0 = arith.constant 0 : index
    %c0_1 = arith.constant 0 : index
    %0 = vector.load %arg1[%c0, %c0_0, %c0_1] : memref<1x65x128xf32, #tpu.memory_space<vmem>>, vector<1x65x128xf32>
    %1 = vector.shape_cast %0 : vector<1x65x128xf32> to vector<65x128xf32>
    %2 = arith.truncf %1 : vector<65x128xf32> to vector<65x128xbf16>
    %c0_2 = arith.constant 0 : index
    %c0_3 = arith.constant 0 : index
    %3 = vector.load %arg2[%c0_2, %c0_3] : memref<128x384xbf16, #tpu.memory_space<vmem>>, vector<128x384xbf16>
    %cst = arith.constant dense<0.000000e+00> : vector<65x384xf32>
    %4 = tpu.matmul %2, %3, %cst {dimension_numbers = #tpu.dot_dimension_numbers<[1], [0], [0], [1], [0, 0, 1, 1], [], []>} : vector<65x128xbf16>, vector<128x384xbf16>, vector<65x384xf32> -> vector<65x384xf32>
    %c0_4 = arith.constant 0 : index
    %c0_5 = arith.constant 0 : index
    %5 = vector.load %arg3[%c0_4, %c0_5] : memref<1x384xf32, #tpu.memory_space<vmem>>, vector<1x384xf32>
    %6 = vector.broadcast %5 : vector<1x384xf32> to vector<65x384xf32>
    %7 = arith.addf %4, %6 : vector<65x384xf32>
    %8 = arith.truncf %7 : vector<65x384xf32> to vector<65x384xbf16>
    %9 = vector.extract_strided_slice %8 {offsets = [0, 0], sizes = [65, 128], strides = [1, 1]} : vector<65x384xbf16> to vector<65x128xbf16>
    %10 = vector.extract_strided_slice %8 {offsets = [0, 128], sizes = [65, 128], strides = [1, 1]} : vector<65x384xbf16> to vector<65x128xbf16>
    %11 = vector.extract_strided_slice %8 {offsets = [0, 256], sizes = [65, 128], strides = [1, 1]} : vector<65x384xbf16> to vector<65x128xbf16>
    %c0_6 = arith.constant 0 : index
    %c0_7 = arith.constant 0 : index
    %12 = vector.load %arg4[%c0_6, %c0_7] : memref<128x128xbf16, #tpu.memory_space<vmem>>, vector<128x128xbf16>
    %13 = vector.extract_strided_slice %9 {offsets = [0, 0], sizes = [65, 32], strides = [1, 1]} : vector<65x128xbf16> to vector<65x32xbf16>
    %14 = vector.extract_strided_slice %10 {offsets = [0, 0], sizes = [65, 32], strides = [1, 1]} : vector<65x128xbf16> to vector<65x32xbf16>
    %15 = vector.extract_strided_slice %11 {offsets = [0, 0], sizes = [65, 32], strides = [1, 1]} : vector<65x128xbf16> to vector<65x32xbf16>
    %cst_8 = arith.constant dense<0.000000e+00> : vector<65x65xf32>
    %16 = tpu.matmul %13, %14, %cst_8 {dimension_numbers = #tpu.dot_dimension_numbers<[1], [1], [0], [0], [0, 0, 1, 0], [], []>} : vector<65x32xbf16>, vector<65x32xbf16>, vector<65x65xf32> -> vector<65x65xf32>
    %cst_9 = arith.constant dense<0xFF800000> : vector<65xf32>
    %17 = vector.multi_reduction <maximumf>, %16, %cst_9 [1] : vector<65x65xf32> to vector<65xf32>
    %18 = vector.shape_cast %17 : vector<65xf32> to vector<65x1xf32>
    %19 = vector.broadcast %18 : vector<65x1xf32> to vector<65x65xf32>
    %20 = arith.subf %16, %19 : vector<65x65xf32>
    %21 = math.exp %20 : vector<65x65xf32>
    %cst_10 = arith.constant dense<0.000000e+00> : vector<65xf32>
    %22 = vector.multi_reduction <add>, %21, %cst_10 [1] : vector<65x65xf32> to vector<65xf32>
    %23 = vector.shape_cast %22 : vector<65xf32> to vector<65x1xf32>
    %24 = tpu.reciprocal %23 {approx = true} : vector<65x1xf32> -> vector<65x1xf32>
    %25 = vector.broadcast %24 : vector<65x1xf32> to vector<65x65xf32>
    %26 = arith.mulf %21, %25 : vector<65x65xf32>
    %27 = arith.truncf %26 : vector<65x65xf32> to vector<65x65xbf16>
    %cst_11 = arith.constant dense<0.000000e+00> : vector<65x32xf32>
    %28 = tpu.matmul %27, %15, %cst_11 {dimension_numbers = #tpu.dot_dimension_numbers<[1], [0], [0], [1], [0, 0, 1, 1], [], []>} : vector<65x65xbf16>, vector<65x32xbf16>, vector<65x32xf32> -> vector<65x32xf32>
    %29 = arith.truncf %28 : vector<65x32xf32> to vector<65x32xbf16>
    %30 = vector.extract_strided_slice %12 {offsets = [0, 0], sizes = [32, 128], strides = [1, 1]} : vector<128x128xbf16> to vector<32x128xbf16>
    %cst_12 = arith.constant dense<0.000000e+00> : vector<65x128xf32>
    %31 = tpu.matmul %29, %30, %cst_12 {dimension_numbers = #tpu.dot_dimension_numbers<[1], [0], [0], [1], [0, 0, 1, 1], [], []>} : vector<65x32xbf16>, vector<32x128xbf16>, vector<65x128xf32> -> vector<65x128xf32>
    %32 = vector.extract_strided_slice %9 {offsets = [0, 32], sizes = [65, 32], strides = [1, 1]} : vector<65x128xbf16> to vector<65x32xbf16>
    %33 = vector.extract_strided_slice %10 {offsets = [0, 32], sizes = [65, 32], strides = [1, 1]} : vector<65x128xbf16> to vector<65x32xbf16>
    %34 = vector.extract_strided_slice %11 {offsets = [0, 32], sizes = [65, 32], strides = [1, 1]} : vector<65x128xbf16> to vector<65x32xbf16>
    %cst_13 = arith.constant dense<0.000000e+00> : vector<65x65xf32>
    %35 = tpu.matmul %32, %33, %cst_13 {dimension_numbers = #tpu.dot_dimension_numbers<[1], [1], [0], [0], [0, 0, 1, 0], [], []>} : vector<65x32xbf16>, vector<65x32xbf16>, vector<65x65xf32> -> vector<65x65xf32>
    %cst_14 = arith.constant dense<0xFF800000> : vector<65xf32>
    %36 = vector.multi_reduction <maximumf>, %35, %cst_14 [1] : vector<65x65xf32> to vector<65xf32>
    %37 = vector.shape_cast %36 : vector<65xf32> to vector<65x1xf32>
    %38 = vector.broadcast %37 : vector<65x1xf32> to vector<65x65xf32>
    %39 = arith.subf %35, %38 : vector<65x65xf32>
    %40 = math.exp %39 : vector<65x65xf32>
    %cst_15 = arith.constant dense<0.000000e+00> : vector<65xf32>
    %41 = vector.multi_reduction <add>, %40, %cst_15 [1] : vector<65x65xf32> to vector<65xf32>
    %42 = vector.shape_cast %41 : vector<65xf32> to vector<65x1xf32>
    %43 = tpu.reciprocal %42 {approx = true} : vector<65x1xf32> -> vector<65x1xf32>
    %44 = vector.broadcast %43 : vector<65x1xf32> to vector<65x65xf32>
    %45 = arith.mulf %40, %44 : vector<65x65xf32>
    %46 = arith.truncf %45 : vector<65x65xf32> to vector<65x65xbf16>
    %cst_16 = arith.constant dense<0.000000e+00> : vector<65x32xf32>
    %47 = tpu.matmul %46, %34, %cst_16 {dimension_numbers = #tpu.dot_dimension_numbers<[1], [0], [0], [1], [0, 0, 1, 1], [], []>} : vector<65x65xbf16>, vector<65x32xbf16>, vector<65x32xf32> -> vector<65x32xf32>
    %48 = arith.truncf %47 : vector<65x32xf32> to vector<65x32xbf16>
    %49 = vector.extract_strided_slice %12 {offsets = [32, 0], sizes = [32, 128], strides = [1, 1]} : vector<128x128xbf16> to vector<32x128xbf16>
    %cst_17 = arith.constant dense<0.000000e+00> : vector<65x128xf32>
    %50 = tpu.matmul %48, %49, %cst_17 {dimension_numbers = #tpu.dot_dimension_numbers<[1], [0], [0], [1], [0, 0, 1, 1], [], []>} : vector<65x32xbf16>, vector<32x128xbf16>, vector<65x128xf32> -> vector<65x128xf32>
    %51 = arith.addf %31, %50 : vector<65x128xf32>
    %52 = vector.extract_strided_slice %9 {offsets = [0, 64], sizes = [65, 32], strides = [1, 1]} : vector<65x128xbf16> to vector<65x32xbf16>
    %53 = vector.extract_strided_slice %10 {offsets = [0, 64], sizes = [65, 32], strides = [1, 1]} : vector<65x128xbf16> to vector<65x32xbf16>
    %54 = vector.extract_strided_slice %11 {offsets = [0, 64], sizes = [65, 32], strides = [1, 1]} : vector<65x128xbf16> to vector<65x32xbf16>
    %cst_18 = arith.constant dense<0.000000e+00> : vector<65x65xf32>
    %55 = tpu.matmul %52, %53, %cst_18 {dimension_numbers = #tpu.dot_dimension_numbers<[1], [1], [0], [0], [0, 0, 1, 0], [], []>} : vector<65x32xbf16>, vector<65x32xbf16>, vector<65x65xf32> -> vector<65x65xf32>
    %cst_19 = arith.constant dense<0xFF800000> : vector<65xf32>
    %56 = vector.multi_reduction <maximumf>, %55, %cst_19 [1] : vector<65x65xf32> to vector<65xf32>
    %57 = vector.shape_cast %56 : vector<65xf32> to vector<65x1xf32>
    %58 = vector.broadcast %57 : vector<65x1xf32> to vector<65x65xf32>
    %59 = arith.subf %55, %58 : vector<65x65xf32>
    %60 = math.exp %59 : vector<65x65xf32>
    %cst_20 = arith.constant dense<0.000000e+00> : vector<65xf32>
    %61 = vector.multi_reduction <add>, %60, %cst_20 [1] : vector<65x65xf32> to vector<65xf32>
    %62 = vector.shape_cast %61 : vector<65xf32> to vector<65x1xf32>
    %63 = tpu.reciprocal %62 {approx = true} : vector<65x1xf32> -> vector<65x1xf32>
    %64 = vector.broadcast %63 : vector<65x1xf32> to vector<65x65xf32>
    %65 = arith.mulf %60, %64 : vector<65x65xf32>
    %66 = arith.truncf %65 : vector<65x65xf32> to vector<65x65xbf16>
    %cst_21 = arith.constant dense<0.000000e+00> : vector<65x32xf32>
    %67 = tpu.matmul %66, %54, %cst_21 {dimension_numbers = #tpu.dot_dimension_numbers<[1], [0], [0], [1], [0, 0, 1, 1], [], []>} : vector<65x65xbf16>, vector<65x32xbf16>, vector<65x32xf32> -> vector<65x32xf32>
    %68 = arith.truncf %67 : vector<65x32xf32> to vector<65x32xbf16>
    %69 = vector.extract_strided_slice %12 {offsets = [64, 0], sizes = [32, 128], strides = [1, 1]} : vector<128x128xbf16> to vector<32x128xbf16>
    %cst_22 = arith.constant dense<0.000000e+00> : vector<65x128xf32>
    %70 = tpu.matmul %68, %69, %cst_22 {dimension_numbers = #tpu.dot_dimension_numbers<[1], [0], [0], [1], [0, 0, 1, 1], [], []>} : vector<65x32xbf16>, vector<32x128xbf16>, vector<65x128xf32> -> vector<65x128xf32>
    %71 = arith.addf %51, %70 : vector<65x128xf32>
    %72 = vector.extract_strided_slice %9 {offsets = [0, 96], sizes = [65, 32], strides = [1, 1]} : vector<65x128xbf16> to vector<65x32xbf16>
    %73 = vector.extract_strided_slice %10 {offsets = [0, 96], sizes = [65, 32], strides = [1, 1]} : vector<65x128xbf16> to vector<65x32xbf16>
    %74 = vector.extract_strided_slice %11 {offsets = [0, 96], sizes = [65, 32], strides = [1, 1]} : vector<65x128xbf16> to vector<65x32xbf16>
    %cst_23 = arith.constant dense<0.000000e+00> : vector<65x65xf32>
    %75 = tpu.matmul %72, %73, %cst_23 {dimension_numbers = #tpu.dot_dimension_numbers<[1], [1], [0], [0], [0, 0, 1, 0], [], []>} : vector<65x32xbf16>, vector<65x32xbf16>, vector<65x65xf32> -> vector<65x65xf32>
    %cst_24 = arith.constant dense<0xFF800000> : vector<65xf32>
    %76 = vector.multi_reduction <maximumf>, %75, %cst_24 [1] : vector<65x65xf32> to vector<65xf32>
    %77 = vector.shape_cast %76 : vector<65xf32> to vector<65x1xf32>
    %78 = vector.broadcast %77 : vector<65x1xf32> to vector<65x65xf32>
    %79 = arith.subf %75, %78 : vector<65x65xf32>
    %80 = math.exp %79 : vector<65x65xf32>
    %cst_25 = arith.constant dense<0.000000e+00> : vector<65xf32>
    %81 = vector.multi_reduction <add>, %80, %cst_25 [1] : vector<65x65xf32> to vector<65xf32>
    %82 = vector.shape_cast %81 : vector<65xf32> to vector<65x1xf32>
    %83 = tpu.reciprocal %82 {approx = true} : vector<65x1xf32> -> vector<65x1xf32>
    %84 = vector.broadcast %83 : vector<65x1xf32> to vector<65x65xf32>
    %85 = arith.mulf %80, %84 : vector<65x65xf32>
    %86 = arith.truncf %85 : vector<65x65xf32> to vector<65x65xbf16>
    %cst_26 = arith.constant dense<0.000000e+00> : vector<65x32xf32>
    %87 = tpu.matmul %86, %74, %cst_26 {dimension_numbers = #tpu.dot_dimension_numbers<[1], [0], [0], [1], [0, 0, 1, 1], [], []>} : vector<65x65xbf16>, vector<65x32xbf16>, vector<65x32xf32> -> vector<65x32xf32>
    %88 = arith.truncf %87 : vector<65x32xf32> to vector<65x32xbf16>
    %89 = vector.extract_strided_slice %12 {offsets = [96, 0], sizes = [32, 128], strides = [1, 1]} : vector<128x128xbf16> to vector<32x128xbf16>
    %cst_27 = arith.constant dense<0.000000e+00> : vector<65x128xf32>
    %90 = tpu.matmul %88, %89, %cst_27 {dimension_numbers = #tpu.dot_dimension_numbers<[1], [0], [0], [1], [0, 0, 1, 1], [], []>} : vector<65x32xbf16>, vector<32x128xbf16>, vector<65x128xf32> -> vector<65x128xf32>
    %91 = arith.addf %71, %90 : vector<65x128xf32>
    %c0_28 = arith.constant 0 : index
    %c0_29 = arith.constant 0 : index
    %92 = vector.load %arg5[%c0_28, %c0_29] : memref<1x128xf32, #tpu.memory_space<vmem>>, vector<1x128xf32>
    %93 = vector.broadcast %92 : vector<1x128xf32> to vector<65x128xf32>
    %94 = arith.addf %91, %93 : vector<65x128xf32>
    %c0_30 = arith.constant 0 : index
    %c0_31 = arith.constant 0 : index
    %c0_32 = arith.constant 0 : index
    %95 = vector.load %arg6[%c0_30, %c0_31, %c0_32] : memref<1x65x128xf32, #tpu.memory_space<vmem>>, vector<1x65x128xf32>
    %96 = vector.shape_cast %95 : vector<1x65x128xf32> to vector<65x128xf32>
    %97 = vector.shape_cast %94 : vector<65x128xf32> to vector<1x65x128xf32>
    tpu.vector_store %arg6[%c0_30, %c0_31, %c0_32], %97 {strides = array<i32>} : memref<1x65x128xf32, #tpu.memory_space<vmem>>, vector<1x65x128xf32>,
    return
  }
  func.func @transform_0(%arg0: i32) -> (i32, i32, i32) {
    %c0_i32 = arith.constant 0 : i32
    %c0_i32_0 = arith.constant 0 : i32
    %c0_i32_1 = arith.constant 0 : i32
    return %arg0, %c0_i32, %c0_i32_0 : i32, i32, i32
  }
  func.func @transform_1(%arg0: i32) -> (i32, i32) {
    %c0_i32 = arith.constant 0 : i32
    %c0_i32_0 = arith.constant 0 : i32
    %c0_i32_1 = arith.constant 0 : i32
    return %c0_i32, %c0_i32_0 : i32, i32
  }
  func.func @transform_2(%arg0: i32) -> (i32, i32) {
    %c0_i32 = arith.constant 0 : i32
    %c0_i32_0 = arith.constant 0 : i32
    %c0_i32_1 = arith.constant 0 : i32
    return %c0_i32, %c0_i32_0 : i32, i32
  }
  func.func @transform_3(%arg0: i32) -> (i32, i32) {
    %c0_i32 = arith.constant 0 : i32
    %c0_i32_0 = arith.constant 0 : i32
    %c0_i32_1 = arith.constant 0 : i32
    return %c0_i32, %c0_i32_0 : i32, i32
  }
  func.func @transform_4(%arg0: i32) -> (i32, i32) {
    %c0_i32 = arith.constant 0 : i32
    %c0_i32_0 = arith.constant 0 : i32
    %c0_i32_1 = arith.constant 0 : i32
    return %c0_i32, %c0_i32_0 : i32, i32
  }
  func.func @transform_5(%arg0: i32) -> (i32, i32, i32) {
    %c0_i32 = arith.constant 0 : i32
    %c0_i32_0 = arith.constant 0 : i32
    %c0_i32_1 = arith.constant 0 : i32
    return %arg0, %c0_i32, %c0_i32_0 : i32, i32, i32
  }
}

</mosaic_0001>

<llo_original>
// kernel: tpu_custom_call.1
$region0: #{tpu_custom_call.1}
  #allocation0 [shape = 'u32[]', space=smem, size = 0x4, offset = 0x4, fixed_abs, tag = 'smem constant byte address 0x4 - core index']
  #allocation1 [shape = 'u32[144,128]{1,0:T(1,128)}', space=vmem, size = 0x12000, scoped, tag = 'internal scratch']
  %s0 = inlined_call_operand.vmem [shape: f32[2,65,128], index: 0, kind: input, shape index: {}]
  %s1 = inlined_call_operand.vmem [shape: bf16[128,384], index: 1, kind: input, shape index: {}]
  %s2 = inlined_call_operand.vmem [shape: f32[1,384], index: 2, kind: input, shape index: {}]
  %s3 = inlined_call_operand.vmem [shape: bf16[128,128], index: 3, kind: input, shape index: {}]
  %s4 = inlined_call_operand.vmem [shape: f32[1,128], index: 4, kind: input, shape index: {}]
  %s5 = inlined_call_operand.vmem [shape: f32[2,65,128], index: 5, kind: output, shape index: {}]
  %s6 = sld [smem:[#allocation0]]
  $region53: #{tpu_custom_call.1} parent=0
    _
  %s8 = ssub.s32 1, %s6
  %s9 = scalar_select 0, %s8, %s6
  loop: start=0, step=1, limit=4
  $region2: #{tpu_custom_call.1} parent=0 // loop_pre_header
    _
  $region3: #{tpu_custom_call.1} parent=0 // loop_header
    %s11 = sphi 0, %s15
    %p12 = scmp.ge.s32.totalorder %s11, 4
    %s21 = sphi 0, %s23
    %s24 = sphi 0, %s21
    %s25 = sphi 0, %s24
    %s41 = sphi 0, %s25
    %s45 = sphi 0, %s45
    %s47 = sphi 0, %s45
    %s48 = sphi 0, %s47
    %s62 = sphi 0, %s48
    %s66 = sphi 0, %s66
    %s68 = sphi 0, %s66
    %s69 = sphi 0, %s68
    %s83 = sphi 0, %s69
    %s87 = sphi 0, %s87
    %s89 = sphi 0, %s87
    %s90 = sphi 0, %s89
    %s104 = sphi 0, %s90
    %s108 = sphi 0, %s108
    %s110 = sphi 0, %s108
    %s111 = sphi 0, %s110
    %s125 = sphi 0, %s111
    %s131 = sphi 0, %s133
    %s134 = sphi 0, %s131
    %s135 = sphi 0, %s134
    %s151 = sphi 0, %s135
  $region4: #{tpu_custom_call.1} parent=0 // loop_header_branch
    %14 = sbr.rel (%p12) target = $region8
  $region5: #{tpu_custom_call.1} parent=0 // loop_body
    %s16 = ssub.s32 %s11, 1
    %s17 = ssub.s32 %s11, 2
    %s18 = sadd.s32 %s11, 1
    %s19 = ssub.s32 %s11, %s18
    %p20 = scmp.eq.s32.totalorder %s19, 0
    %s22 = sadd.s32 %s21, 1
    %s23 = scalar_select %p20, %s21, %s22
    %p26 = pneg %p20
    %p27 = scmp.eq.s32.totalorder %s11, 1
    %p28 = por %p26, %p27
    %p29 = scmp.ne.s32.totalorder %s21, %s24
    %p30 = scmp.eq.s32.totalorder %s11, 0
    %p31 = por %p29, %p30
    %p32 = scmp.ne.s32.totalorder %s21, %s24
    %p33 = scmp.eq.s32.totalorder %s16, 1
    %p34 = por %p32, %p33
    %p35 = scmp.ne.s32.totalorder %s24, %s25
    %p36 = scmp.eq.s32.totalorder %s16, 0
    %p37 = por %p35, %p36
    %p38 = scmp.ne.s32.totalorder %s24, %s25
    %p39 = scmp.eq.s32.totalorder %s17, 1
    %p40 = por %p38, %p39
    %p42 = scmp.ne.s32.totalorder %s25, %s41
    %p43 = scmp.eq.s32.totalorder %s17, 0
    %p44 = por %p42, %p43
    %s46 = sadd.s32 %s45, 1
    %p49 = scmp.eq.s32.totalorder %s11, 1
    %p50 = scmp.ne.s32.totalorder %s45, %s47
    %p51 = scmp.eq.s32.totalorder %s11, 0
    %p52 = por %p50, %p51
    %p53 = scmp.ne.s32.totalorder %s45, %s47
    %p54 = scmp.eq.s32.totalorder %s16, 1
    %p55 = por %p53, %p54
    %p56 = scmp.ne.s32.totalorder %s47, %s48
    %p57 = scmp.eq.s32.totalorder %s16, 0
    %p58 = por %p56, %p57
    %p59 = scmp.ne.s32.totalorder %s47, %s48
    %p60 = scmp.eq.s32.totalorder %s17, 1
    %p61 = por %p59, %p60
    %p63 = scmp.ne.s32.totalorder %s48, %s62
    %p64 = scmp.eq.s32.totalorder %s17, 0
    %p65 = por %p63, %p64
    %s67 = sadd.s32 %s66, 1
    %p70 = scmp.eq.s32.totalorder %s11, 1
    %p71 = scmp.ne.s32.totalorder %s66, %s68
    %p72 = scmp.eq.s32.totalorder %s11, 0
    %p73 = por %p71, %p72
    %p74 = scmp.ne.s32.totalorder %s66, %s68
    %p75 = scmp.eq.s32.totalorder %s16, 1
    %p76 = por %p74, %p75
    %p77 = scmp.ne.s32.totalorder %s68, %s69
    %p78 = scmp.eq.s32.totalorder %s16, 0
    %p79 = por %p77, %p78
    %p80 = scmp.ne.s32.totalorder %s68, %s69
    %p81 = scmp.eq.s32.totalorder %s17, 1
    %p82 = por %p80, %p81
    %p84 = scmp.ne.s32.totalorder %s69, %s83
    %p85 = scmp.eq.s32.totalorder %s17, 0
    %p86 = por %p84, %p85
    %s88 = sadd.s32 %s87, 1
    %p91 = scmp.eq.s32.totalorder %s11, 1
    %p92 = scmp.ne.s32.totalorder %s87, %s89
    %p93 = scmp.eq.s32.totalorder %s11, 0
    %p94 = por %p92, %p93
    %p95 = scmp.ne.s32.totalorder %s87, %s89
    %p96 = scmp.eq.s32.totalorder %s16, 1
    %p97 = por %p95, %p96
    %p98 = scmp.ne.s32.totalorder %s89, %s90
    %p99 = scmp.eq.s32.totalorder %s16, 0
    %p100 = por %p98, %p99
    %p101 = scmp.ne.s32.totalorder %s89, %s90
    %p102 = scmp.eq.s32.totalorder %s17, 1
    %p103 = por %p101, %p102
    %p105 = scmp.ne.s32.totalorder %s90, %s104
    %p106 = scmp.eq.s32.totalorder %s17, 0
    %p107 = por %p105, %p106
    %s109 = sadd.s32 %s108, 1
    %p112 = scmp.eq.s32.totalorder %s11, 1
    %p113 = scmp.ne.s32.totalorder %s108, %s110
    %p114 = scmp.eq.s32.totalorder %s11, 0
    %p115 = por %p113, %p114
    %p116 = scmp.ne.s32.totalorder %s108, %s110
    %p117 = scmp.eq.s32.totalorder %s16, 1
    %p118 = por %p116, %p117
    %p119 = scmp.ne.s32.totalorder %s110, %s111
    %p120 = scmp.eq.s32.totalorder %s16, 0
    %p121 = por %p119, %p120
    %p122 = scmp.ne.s32.totalorder %s110, %s111
    %p123 = scmp.eq.s32.totalorder %s17, 1
    %p124 = por %p122, %p123
    %p126 = scmp.ne.s32.totalorder %s111, %s125
    %p127 = scmp.eq.s32.totalorder %s17, 0
    %p128 = por %p126, %p127
    %s129 = ssub.s32 %s11, %s18
    %p130 = scmp.eq.s32.totalorder %s129, 0
    %s132 = sadd.s32 %s131, 1
    %s133 = scalar_select %p130, %s131, %s132
    %p136 = pneg %p130
    %p137 = scmp.eq.s32.totalorder %s11, 1
    %p138 = por %p136, %p137
    %p139 = scmp.ne.s32.totalorder %s131, %s134
    %p140 = scmp.eq.s32.totalorder %s11, 0
    %p141 = por %p139, %p140
    %p142 = scmp.ne.s32.totalorder %s131, %s134
    %p143 = scmp.eq.s32.totalorder %s16, 1
    %p144 = por %p142, %p143
    %p145 = scmp.ne.s32.totalorder %s134, %s135
    %p146 = scmp.eq.s32.totalorder %s16, 0
    %p147 = por %p145, %p146
    %p148 = scmp.ne.s32.totalorder %s134, %s135
    %p149 = scmp.eq.s32.totalorder %s17, 1
    %p150 = por %p148, %p149
    %p152 = scmp.ne.s32.totalorder %s135, %s151
    %p153 = scmp.eq.s32.totalorder %s17, 0
    %p154 = por %p152, %p153
    %p155 = scmp.le.s32.totalorder 1, %s11
    %p156 = scmp.lt.s32.totalorder %s11, 3
    %p157 = pnand %p155, %p156
    %p158 = pneg %p157
    // Predicated region
    $region9: #{tpu_custom_call.1} parent=5 // pred_check
      _
    $region10: #{tpu_custom_call.1} parent=5 // pred_check_branch
      %160 = sbr.rel (%p157) target = $region12
    $region11: #{tpu_custom_call.1} parent=5 // pred_region
      %s161 = ssub.s32 %s11, 1
      // Predicated region
      $region13: #{tpu_custom_call.1} parent=11 // pred_check
        %p162 = pneg %p58
      $region14: #{tpu_custom_call.1} parent=11 // pred_check_branch
        %164 = sbr.rel (%p162) target = $region16
      $region15: #{tpu_custom_call.1} parent=11 // pred_region
        _
      $region16: #{tpu_custom_call.1} parent=11 // pred_fallthru
        _
      // Predicated region
      $region17: #{tpu_custom_call.1} parent=11 // pred_check
        %p165 = pneg %p79
      $region18: #{tpu_custom_call.1} parent=11 // pred_check_branch
        %167 = sbr.rel (%p165) target = $region20
      $region19: #{tpu_custom_call.1} parent=11 // pred_region
        _
      $region20: #{tpu_custom_call.1} parent=11 // pred_fallthru
        _
      // Predicated region
      $region21: #{tpu_custom_call.1} parent=11 // pred_check
        %p168 = pneg %p100
      $region22: #{tpu_custom_call.1} parent=11 // pred_check_branch
        %170 = sbr.rel (%p168) target = $region24
      $region23: #{tpu_custom_call.1} parent=11 // pred_region
        _
      $region24: #{tpu_custom_call.1} parent=11 // pred_fallthru
        _
      // Predicated region
      $region25: #{tpu_custom_call.1} parent=11 // pred_check
        %p171 = pneg %p121
      $region26: #{tpu_custom_call.1} parent=11 // pred_check_branch
        %173 = sbr.rel (%p171) target = $region28
      $region27: #{tpu_custom_call.1} parent=11 // pred_region
        _
      $region28: #{tpu_custom_call.1} parent=11 // pred_fallthru
        _
    $region12: #{tpu_custom_call.1} parent=5 // pred_fallthru
      _
    %p174 = scmp.lt.s32.totalorder %s11, 2
    // Predicated region
    $region29: #{tpu_custom_call.1} parent=5 // pred_check
      %p175 = pneg %p174
    $region30: #{tpu_custom_call.1} parent=5 // pred_check_branch
      %177 = sbr.rel (%p175) target = $region32
    $region31: #{tpu_custom_call.1} parent=5 // pred_region
      // Predicated region
      $region33: #{tpu_custom_call.1} parent=31 // pred_check
        %p178 = pneg %p31
      $region34: #{tpu_custom_call.1} parent=31 // pred_check_branch
        %180 = sbr.rel (%p178) target = $region36
      $region35: #{tpu_custom_call.1} parent=31 // pred_region
        %p181 = scmp.lt.s32.totalorder %s11, 1
        %s182 = scalar_select %p181, %s11, 1
        %s183 = smul.addr %s182, 9
        %s184 = smul.addr %s183, 8
        %s185 = scalar_lea.vmem %s0, %s184
      $region36: #{tpu_custom_call.1} parent=31 // pred_fallthru
        _
    $region32: #{tpu_custom_call.1} parent=5 // pred_fallthru
      _
    %p186 = scmp.le.s32.totalorder 1, %s11
    %p187 = scmp.lt.s32.totalorder %s11, 3
    %p188 = pnand %p186, %p187
    %p189 = pneg %p188
    // Predicated region
    $region37: #{tpu_custom_call.1} parent=5 // pred_check
      _
    $region38: #{tpu_custom_call.1} parent=5 // pred_check_branch
      %191 = sbr.rel (%p188) target = $region40
    $region39: #{tpu_custom_call.1} parent=5 // pred_region
      %s192 = ssub.s32 %s11, 1
      %p193 = scmp.lt.s32.totalorder %s16, 1
      %s194 = scalar_select %p193, %s16, 1
      %s195 = smul.addr %s194, 9
      %s196 = smul.addr %s195, 8
      %s197 = scalar_lea.vmem %s0, %s196
      %p198 = pneg %p37
      %p199 = pneg %p34
      %p200 = pneg %p58
      %p201 = pneg %p55
      %p202 = pneg %p79
      %p203 = pneg %p76
      %p204 = pneg %p100
      %p205 = pneg %p97
      %p206 = pneg %p121
      %p207 = pneg %p118
      %p208 = pneg %p147
      %p209 = pneg %p144
      %p210 = scmp.lt.s32.totalorder %s16, 1
      %s211 = scalar_select %p210, %s16, 1
      %s212 = smul.addr %s211, 9
      %s213 = smul.addr %s212, 8
      %s214 = scalar_lea.vmem %s5, %s213
      %p215 = scmp.lt.s32.totalorder %s16, 1
      %s216 = scalar_select %p215, %s16, 1
      %s217 = smul.addr %s216, 9
      %s218 = smul.addr %s217, 8
      %s219 = scalar_lea.vmem %s0, %s218
      %p220 = scmp.lt.s32.totalorder %s16, 1
      %s221 = scalar_select %p220, %s16, 1
      %s222 = smul.addr %s221, 9
      %s223 = smul.addr %s222, 8
      %s224 = scalar_lea.vmem %s5, %s223
      %v226 = vld [vmem:[%s219] sm:$0xff]
      %v227 = vld [vmem:[%s219 + $0x8] sm:$0xff]
      %v228 = vld [vmem:[%s219 + $0x10] sm:$0xff]
      %v229 = vld [vmem:[%s219 + $0x18] sm:$0xff]
      %v230 = vld [vmem:[%s219 + $0x20] sm:$0xff]
      %v231 = vld [vmem:[%s219 + $0x28] sm:$0xff]
      %v232 = vld [vmem:[%s219 + $0x30] sm:$0xff]
      %v233 = vld [vmem:[%s219 + $0x38] sm:$0xff]
      %v234 = vld [vmem:[%s219 + $0x40] sm:$0x1]
      %v235 = vpack.c.bf16 %v227, %v226
      %v236 = vpack.c.bf16 %v229, %v228
      %v237 = vpack.c.bf16 %v231, %v230
      %v238 = vpack.c.bf16 %v233, %v232
      %v239 = vpack.c.bf16 %v234, %v234
      %v240 = vld [vmem:[%s1] sm:$0xff]
      %v241 = vld [vmem:[%s1 + $0x8] sm:$0xf]
      %v242 = vld [vmem:[%s1 + $0xc] sm:$0xff]
      %v243 = vld [vmem:[%s1 + $0x14] sm:$0xf]
      %v244 = vld [vmem:[%s1 + $0x18] sm:$0xff]
      %v245 = vld [vmem:[%s1 + $0x20] sm:$0xf]
      %v246 = vld [vmem:[%s1 + $0x24] sm:$0xff]
      %v247 = vld [vmem:[%s1 + $0x2c] sm:$0xf]
      %v248 = vld [vmem:[%s1 + $0x30] sm:$0xff]
      %v249 = vld [vmem:[%s1 + $0x38] sm:$0xf]
      %v250 = vld [vmem:[%s1 + $0x3c] sm:$0xff]
      %v251 = vld [vmem:[%s1 + $0x44] sm:$0xf]
      %v252 = vld [vmem:[%s1 + $0x48] sm:$0xff]
      %v253 = vld [vmem:[%s1 + $0x50] sm:$0xf]
      %v254 = vld [vmem:[%s1 + $0x54] sm:$0xff]
      %v255 = vld [vmem:[%s1 + $0x5c] sm:$0xf]
      %v256 = vld [vmem:[%s1 + $0x60] sm:$0xff]
      %v257 = vld [vmem:[%s1 + $0x68] sm:$0xf]
      %v258 = vld [vmem:[%s1 + $0x6c] sm:$0xff]
      %v259 = vld [vmem:[%s1 + $0x74] sm:$0xf]
      %v260 = vld [vmem:[%s1 + $0x78] sm:$0xff]
      %v261 = vld [vmem:[%s1 + $0x80] sm:$0xf]
      %v262 = vld [vmem:[%s1 + $0x84] sm:$0xff]
      %v263 = vld [vmem:[%s1 + $0x8c] sm:$0xf]
      %v264 = vld [vmem:[%s1 + $0x90] sm:$0xff]
      %v265 = vld [vmem:[%s1 + $0x98] sm:$0xf]
      %v266 = vld [vmem:[%s1 + $0x9c] sm:$0xff]
      %v267 = vld [vmem:[%s1 + $0xa4] sm:$0xf]
      %v268 = vld [vmem:[%s1 + $0xa8] sm:$0xff]
      %v269 = vld [vmem:[%s1 + $0xb0] sm:$0xf]
      %v270 = vld [vmem:[%s1 + $0xb4] sm:$0xff]
      %v271 = vld [vmem:[%s1 + $0xbc] sm:$0xf]
      %v272 = vld [vmem:[%s2] sm:$0x7]
      %v274 = vlaneseq
      %v275 = vshrl.u32 %v274, 7
      %v276 = vsub.s32 0, %v275
      %v277 = vrot.slane %v272, %v276
      %v278 = vlaneseq
      %v279 = vshrl.u32 %v278, 7
      %v280 = vsub.s32 1, %v279
      %v281 = vrot.slane %v272, %v280
      %v282 = vlaneseq
      %v283 = vshrl.u32 %v282, 7
      %v284 = vsub.s32 2, %v283
      %v285 = vrot.slane %v272, %v284
      %v321 = vunpack.c.l.b16 %v240
      %v322 = vunpack.c.h.b16 %v240
      %v323 = vunpack.c.l.b16 %v241
      %v324 = vunpack.c.l.b16 %v242
      %v325 = vunpack.c.h.b16 %v242
      %v326 = vunpack.c.l.b16 %v243
      %v327 = vunpack.c.l.b16 %v244
      %v328 = vunpack.c.h.b16 %v244
      %v329 = vunpack.c.l.b16 %v245
      %v330 = vunpack.c.l.b16 %v246
      %v331 = vunpack.c.h.b16 %v246
      %v332 = vunpack.c.l.b16 %v247
      %v333 = vunpack.c.l.b16 %v248
      %v334 = vunpack.c.h.b16 %v248
      %v335 = vunpack.c.l.b16 %v249
      %v336 = vunpack.c.l.b16 %v250
      %v337 = vunpack.c.h.b16 %v250
      %v338 = vunpack.c.l.b16 %v251
      %v339 = vunpack.c.l.b16 %v252
      %v340 = vunpack.c.h.b16 %v252
      %v341 = vunpack.c.l.b16 %v253
      %v342 = vunpack.c.l.b16 %v254
      %v343 = vunpack.c.h.b16 %v254
      %v344 = vunpack.c.l.b16 %v255
      %v345 = vunpack.c.l.b16 %v256
      %v346 = vunpack.c.h.b16 %v256
      %v347 = vunpack.c.l.b16 %v257
      %v348 = vunpack.c.l.b16 %v258
      %v349 = vunpack.c.h.b16 %v258
      %v350 = vunpack.c.l.b16 %v259
      %v351 = vunpack.c.l.b16 %v260
      %v352 = vunpack.c.h.b16 %v260
      %v353 = vunpack.c.l.b16 %v261
      %v354 = vunpack.c.l.b16 %v262
      %v355 = vunpack.c.h.b16 %v262
      %v356 = vunpack.c.l.b16 %v263
      %v357 = vunpack.c.l.b16 %v264
      %v358 = vunpack.c.h.b16 %v264
      %v359 = vunpack.c.l.b16 %v265
      %v360 = vunpack.c.l.b16 %v266
      %v361 = vunpack.c.h.b16 %v266
      %v362 = vunpack.c.l.b16 %v267
      %v363 = vunpack.c.l.b16 %v268
      %v364 = vunpack.c.h.b16 %v268
      %v365 = vunpack.c.l.b16 %v269
      %v366 = vunpack.c.l.b16 %v270
      %v367 = vunpack.c.h.b16 %v270
      %v368 = vunpack.c.l.b16 %v271
      %v369 = vpack.c.b16 %v324, %v321
      %v370 = vpack.c.b16 %v325, %v322
      %v371 = vpack.c.b16 %v326, %v323
      %v372 = vpack.c.b16 %v330, %v327
      %v373 = vpack.c.b16 %v331, %v328
      %v374 = vpack.c.b16 %v332, %v329
      %v375 = vpack.c.b16 %v336, %v333
      %v376 = vpack.c.b16 %v337, %v334
      %v377 = vpack.c.b16 %v338, %v335
      %v378 = vpack.c.b16 %v342, %v339
      %v379 = vpack.c.b16 %v343, %v340
      %v380 = vpack.c.b16 %v344, %v341
      %v381 = vpack.c.b16 %v348, %v345
      %v382 = vpack.c.b16 %v349, %v346
      %v383 = vpack.c.b16 %v350, %v347
      %v384 = vpack.c.b16 %v354, %v351
      %v385 = vpack.c.b16 %v355, %v352
      %v386 = vpack.c.b16 %v356, %v353
      %v387 = vpack.c.b16 %v360, %v357
      %v388 = vpack.c.b16 %v361, %v358
      %v389 = vpack.c.b16 %v362, %v359
      %v390 = vpack.c.b16 %v366, %v363
      %v391 = vpack.c.b16 %v367, %v364
      %v392 = vpack.c.b16 %v368, %v365
      %417 = vmatprep.subr.bf16.mxu0 %v391
      %418 = vmatpush1.bf16.msra.mxu0 %v390
      %419 = vmatprep.subr.bf16.mxu0 %v388
      %420 = vmatpush1.bf16.msra.mxu0 %v387
      %421 = vmatprep.subr.bf16.mxu0 %v385
      %422 = vmatpush1.bf16.msra.mxu0 %v384
      %423 = vmatprep.subr.bf16.mxu0 %v382
      %424 = vmatpush1.bf16.msra.mxu0 %v381
      %425 = vmatprep.subr.bf16.mxu0 %v379
      %426 = vmatpush1.bf16.msra.mxu0 %v378
      %427 = vmatprep.subr.bf16.mxu0 %v376
      %428 = vmatpush1.bf16.msra.mxu0 %v375
      %429 = vmatprep.subr.bf16.mxu0 %v373
      %430 = vmatpush1.bf16.msra.mxu0 %v372
      %431 = vmatprep.subr.bf16.mxu0 %v370
      %432 = vmatpush1.bf16.msra.mxu0 %v369
      %433 = vmatprep.subr.bf16.mxu0 0
      %434 = vmatpush2.bf16.msra.mxu0 0
      %435 = vmatprep.subr.bf16.mxu0 0
      %436 = vmatpush2.bf16.msra.mxu0 0
      %437 = vmatprep.subr.bf16.mxu0 0
      %438 = vmatpush2.bf16.msra.mxu0 0
      %439 = vmatprep.subr.bf16.mxu0 0
      %440 = vmatpush2.bf16.msra.mxu0 0
      %441 = vmatprep.subr.bf16.mxu0 0
      %442 = vmatpush2.bf16.msra.mxu0 0
      %443 = vmatprep.subr.bf16.mxu0 0
      %444 = vmatpush2.bf16.msra.mxu0 0
      %445 = vmatprep.subr.bf16.mxu0 0
      %446 = vmatpush2.bf16.msra.mxu0 0
      %447 = vmatprep.subr.bf16.mxu0 0
      %448 = vmatpush2.bf16.msra.mxu0 0
      %449 = vmatprep.mubr.bf16.mxu0 0
      %450 = vmatmul.mubr.bf16.gmra.mxu0 %v235
      %v451 = vpop.f32.mrf.mxu0
      %v452 = vadd.f32 %v277, %v451
      %v453 = vpop.f32.mrf.mxu0
      %v454 = vadd.f32 %v281, %v453
      %v455 = vpop.f32.mrf.mxu0
      %v456 = vadd.f32 %v277, %v455
      %v457 = vpop.f32.mrf.mxu0
      %v458 = vadd.f32 %v281, %v457
      %459 = vmatprep.mubr.bf16.mxu0 0
      %460 = vmatmul.mubr.bf16.gmra.mxu0 %v236
      %v461 = vpop.f32.mrf.mxu0
      %v462 = vadd.f32 %v277, %v461
      %v463 = vpop.f32.mrf.mxu0
      %v464 = vadd.f32 %v281, %v463
      %v465 = vpop.f32.mrf.mxu0
      %v466 = vadd.f32 %v277, %v465
      %v467 = vpop.f32.mrf.mxu0
      %v468 = vadd.f32 %v281, %v467
      %469 = vmatprep.mubr.bf16.mxu0 0
      %470 = vmatmul.mubr.bf16.gmra.mxu0 %v237
      %v471 = vpop.f32.mrf.mxu0
      %v472 = vadd.f32 %v277, %v471
      %v473 = vpop.f32.mrf.mxu0
      %v474 = vadd.f32 %v281, %v473
      %v475 = vpop.f32.mrf.mxu0
      %v476 = vadd.f32 %v277, %v475
      %v477 = vpop.f32.mrf.mxu0
      %v478 = vadd.f32 %v281, %v477
      %479 = vmatprep.mubr.bf16.mxu0 0
      %480 = vmatmul.mubr.bf16.gmra.mxu0 %v238
      %v481 = vpop.f32.mrf.mxu0
      %v482 = vadd.f32 %v277, %v481
      %v483 = vpop.f32.mrf.mxu0
      %v484 = vadd.f32 %v281, %v483
      %v485 = vpop.f32.mrf.mxu0
      %v486 = vadd.f32 %v277, %v485
      %v487 = vpop.f32.mrf.mxu0
      %v488 = vadd.f32 %v281, %v487
      %489 = vmatprep.mubr.bf16.mxu0 0
      %490 = vmatmul.mubr.bf16.gmra.mxu0 %v239
      %v491 = vpop.f32.mrf.mxu0
      %v492 = vadd.f32 %v277, %v491
      %v493 = vpop.f32.mrf.mxu0
      %v494 = vadd.f32 %v281, %v493
      %v495 = vpop.f32.mrf.mxu0
      %v496 = vpop.f32.mrf.mxu0
      %497 = vdwg.mxu0
      %498 = vmatprep.subr.bf16.mxu0 0
      %499 = vmatpush1.bf16.msra.mxu0 %v392
      %500 = vmatprep.subr.bf16.mxu0 0
      %501 = vmatpush1.bf16.msra.mxu0 %v389
      %502 = vmatprep.subr.bf16.mxu0 0
      %503 = vmatpush1.bf16.msra.mxu0 %v386
      %504 = vmatprep.subr.bf16.mxu0 0
      %505 = vmatpush1.bf16.msra.mxu0 %v383
      %506 = vmatprep.subr.bf16.mxu0 0
      %507 = vmatpush1.bf16.msra.mxu0 %v380
      %508 = vmatprep.subr.bf16.mxu0 0
      %509 = vmatpush1.bf16.msra.mxu0 %v377
      %510 = vmatprep.subr.bf16.mxu0 0
      %511 = vmatpush1.bf16.msra.mxu0 %v374
      %512 = vmatprep.subr.bf16.mxu0 0
      %513 = vmatpush1.bf16.msra.mxu0 %v371
      %514 = vmatprep.subr.bf16.mxu0 0
      %515 = vmatpush2.bf16.msra.mxu0 0
      %516 = vmatprep.subr.bf16.mxu0 0
      %517 = vmatpush2.bf16.msra.mxu0 0
      %518 = vmatprep.subr.bf16.mxu0 0
      %519 = vmatpush2.bf16.msra.mxu0 0
      %520 = vmatprep.subr.bf16.mxu0 0
      %521 = vmatpush2.bf16.msra.mxu0 0
      %522 = vmatprep.subr.bf16.mxu0 0
      %523 = vmatpush2.bf16.msra.mxu0 0
      %524 = vmatprep.subr.bf16.mxu0 0
      %525 = vmatpush2.bf16.msra.mxu0 0
      %526 = vmatprep.subr.bf16.mxu0 0
      %527 = vmatpush2.bf16.msra.mxu0 0
      %528 = vmatprep.subr.bf16.mxu0 0
      %529 = vmatpush2.bf16.msra.mxu0 0
      %530 = vmatprep.mubr.bf16.mxu0 0
      %531 = vmatmul.mubr.bf16.gmra.mxu0 %v235
      %v532 = vpop.f32.mrf.mxu0
      %v533 = vadd.f32 %v285, %v532
      %v534 = vpop.f32.mrf.mxu0
      %v535 = vpop.f32.mrf.mxu0
      %v536 = vadd.f32 %v285, %v535
      %v537 = vpop.f32.mrf.mxu0
      %538 = vmatprep.mubr.bf16.mxu0 0
      %539 = vmatmul.mubr.bf16.gmra.mxu0 %v236
      %v540 = vpop.f32.mrf.mxu0
      %v541 = vadd.f32 %v285, %v540
      %v542 = vpop.f32.mrf.mxu0
      %v543 = vpop.f32.mrf.mxu0
      %v544 = vadd.f32 %v285, %v543
      %v545 = vpop.f32.mrf.mxu0
      %546 = vmatprep.mubr.bf16.mxu0 0
      %547 = vmatmul.mubr.bf16.gmra.mxu0 %v237
      %v548 = vpop.f32.mrf.mxu0
      %v549 = vadd.f32 %v285, %v548
      %v550 = vpop.f32.mrf.mxu0
      %v551 = vpop.f32.mrf.mxu0
      %v552 = vadd.f32 %v285, %v551
      %v553 = vpop.f32.mrf.mxu0
      %554 = vmatprep.mubr.bf16.mxu0 0
      %555 = vmatmul.mubr.bf16.gmra.mxu0 %v238
      %v556 = vpop.f32.mrf.mxu0
      %v557 = vadd.f32 %v285, %v556
      %v558 = vpop.f32.mrf.mxu0
      %v559 = vpop.f32.mrf.mxu0
      %v560 = vadd.f32 %v285, %v559
      %v561 = vpop.f32.mrf.mxu0
      %562 = vmatprep.mubr.bf16.mxu0 0
      %563 = vmatmul.mubr.bf16.gmra.mxu0 %v239
      %v564 = vpop.f32.mrf.mxu0
      %v565 = vadd.f32 %v285, %v564
      %v566 = vpop.f32.mrf.mxu0
      %v567 = vpop.f32.mrf.mxu0
      %v568 = vpop.f32.mrf.mxu0
      %569 = vdwg.mxu0
      %v570 = vpack.c.bf16 %v456, %v452
      %v571 = vpack.c.bf16 %v458, %v454
      %v572 = vpack.c.bf16 %v536, %v533
      %v573 = vpack.c.bf16 %v466, %v462
      %v574 = vpack.c.bf16 %v468, %v464
      %v575 = vpack.c.bf16 %v544, %v541
      %v576 = vpack.c.bf16 %v476, %v472
      %v577 = vpack.c.bf16 %v478, %v474
      %v578 = vpack.c.bf16 %v552, %v549
      %v579 = vpack.c.bf16 %v486, %v482
      %v580 = vpack.c.bf16 %v488, %v484
      %v581 = vpack.c.bf16 %v560, %v557
      %v582 = vpack.c.bf16 %v492, %v492
      %v583 = vpack.c.bf16 %v494, %v494
      %v584 = vpack.c.bf16 %v565, %v565
      %v585 = vld [vmem:[%s3] sm:$0xf]
      %v586 = vld [vmem:[%s3 + $0x4] sm:$0xf]
      %v587 = vld [vmem:[%s3 + $0x8] sm:$0xf]
      %v588 = vld [vmem:[%s3 + $0xc] sm:$0xf]
      %v589 = vld [vmem:[%s3 + $0x10] sm:$0xf]
      %v590 = vld [vmem:[%s3 + $0x14] sm:$0xf]
      %v591 = vld [vmem:[%s3 + $0x18] sm:$0xf]
      %v592 = vld [vmem:[%s3 + $0x1c] sm:$0xf]
      %v593 = vld [vmem:[%s3 + $0x20] sm:$0xf]
      %v594 = vld [vmem:[%s3 + $0x24] sm:$0xf]
      %v595 = vld [vmem:[%s3 + $0x28] sm:$0xf]
      %v596 = vld [vmem:[%s3 + $0x2c] sm:$0xf]
      %v597 = vld [vmem:[%s3 + $0x30] sm:$0xf]
      %v598 = vld [vmem:[%s3 + $0x34] sm:$0xf]
      %v599 = vld [vmem:[%s3 + $0x38] sm:$0xf]
      %v600 = vld [vmem:[%s3 + $0x3c] sm:$0xf]
      %vm601 = vcmask 261120
      %v603 = vsel %vm601, %v570, 0
      %v606 = vsel %vm601, %v573, 0
      %v609 = vsel %vm601, %v576, 0
      %v612 = vsel %vm601, %v579, 0
      %v615 = vsel %vm601, %v582, 0
      %v618 = vsel %vm601, %v571, 0
      %v621 = vsel %vm601, %v574, 0
      %v624 = vsel %vm601, %v577, 0
      %v627 = vsel %vm601, %v580, 0
      %v630 = vsel %vm601, %v583, 0
      %632 = vmatprep.subr.bf16.mxu0 0
      %633 = vmatpush1.bf16.xpose.msra.mxu0 0
      %634 = vmatprep.subr.bf16.mxu0 0
      %635 = vmatpush1.bf16.xpose.msra.mxu0 0
      %636 = vmatprep.subr.bf16.mxu0 0
      %637 = vmatpush1.bf16.xpose.msra.mxu0 0
      %638 = vmatprep.subr.bf16.mxu0 0
      %639 = vmatpush1.bf16.xpose.msra.mxu0 %v630
      %640 = vmatprep.subr.bf16.mxu0 0
      %641 = vmatpush1.bf16.xpose.msra.mxu0 %v627
      %642 = vmatprep.subr.bf16.mxu0 0
      %643 = vmatpush1.bf16.xpose.msra.mxu0 %v624
      %644 = vmatprep.subr.bf16.mxu0 0
      %645 = vmatpush1.bf16.xpose.msra.mxu0 %v621
      %646 = vmatprep.subr.bf16.mxu0 0
      %647 = vmatpush1.bf16.xpose.msra.mxu0 %v618
      %648 = vmatprep.subr.bf16.mxu0 0
      %649 = vmatpush2.bf16.xpose.msra.mxu0 0
      %650 = vmatprep.subr.bf16.mxu0 0
      %651 = vmatpush2.bf16.xpose.msra.mxu0 0
      %652 = vmatprep.subr.bf16.mxu0 0
      %653 = vmatpush2.bf16.xpose.msra.mxu0 0
      %654 = vmatprep.subr.bf16.mxu0 0
      %655 = vmatpush2.bf16.xpose.msra.mxu0 0
      %656 = vmatprep.subr.bf16.mxu0 0
      %657 = vmatpush2.bf16.xpose.msra.mxu0 0
      %658 = vmatprep.subr.bf16.mxu0 0
      %659 = vmatpush2.bf16.xpose.msra.mxu0 0
      %660 = vmatprep.subr.bf16.mxu0 0
      %661 = vmatpush2.bf16.xpose.msra.mxu0 0
      %662 = vmatprep.subr.bf16.mxu0 0
      %663 = vmatpush2.bf16.xpose.msra.mxu0 0
      %664 = vmatprep.mubr.bf16.mxu0 0
      %665 = vmatmul.mubr.bf16.gmra.mxu0 %v603
      %v666 = vpop.f32.mrf.mxu0
      %v667 = vadd.f32 0.0, %v666
      %v668 = vpop.f32.mrf.mxu0
      %v669 = vpop.f32.mrf.mxu0
      %v670 = vadd.f32 0.0, %v669
      %v671 = vpop.f32.mrf.mxu0
      %672 = vmatprep.mubr.bf16.mxu0 0
      %673 = vmatmul.mubr.bf16.gmra.mxu0 %v606
      %v674 = vpop.f32.mrf.mxu0
      %v675 = vadd.f32 0.0, %v674
      %v676 = vpop.f32.mrf.mxu0
      %v677 = vpop.f32.mrf.mxu0
      %v678 = vadd.f32 0.0, %v677
      %v679 = vpop.f32.mrf.mxu0
      %680 = vmatprep.mubr.bf16.mxu0 0
      %681 = vmatmul.mubr.bf16.gmra.mxu0 %v609
      %v682 = vpop.f32.mrf.mxu0
      %v683 = vadd.f32 0.0, %v682
      %v684 = vpop.f32.mrf.mxu0
      %v685 = vpop.f32.mrf.mxu0
      %v686 = vadd.f32 0.0, %v685
      %v687 = vpop.f32.mrf.mxu0
      %688 = vmatprep.mubr.bf16.mxu0 0
      %689 = vmatmul.mubr.bf16.gmra.mxu0 %v612
      %v690 = vpop.f32.mrf.mxu0
      %v691 = vadd.f32 0.0, %v690
      %v692 = vpop.f32.mrf.mxu0
      %v693 = vpop.f32.mrf.mxu0
      %v694 = vadd.f32 0.0, %v693
      %v695 = vpop.f32.mrf.mxu0
      %696 = vmatprep.mubr.bf16.mxu0 0
      %697 = vmatmul.mubr.bf16.gmra.mxu0 %v615
      %v698 = vpop.f32.mrf.mxu0
      %v699 = vadd.f32 0.0, %v698
      %v700 = vpop.f32.mrf.mxu0
      %v701 = vpop.f32.mrf.mxu0
      %v702 = vpop.f32.mrf.mxu0
      %703 = vdwg.mxu0
      %vm704 = vcmask 531456
      %v705 = vsel %vm704, %v667, -inf
      %706 = vmax.xlane.f32.xlu0 %v705
      %v707 = vpop.xlane.xlu0 %706
      %v708 = vsel %vm704, %v670, -inf
      %709 = vmax.xlane.f32.xlu0 %v708
      %v710 = vpop.xlane.xlu0 %709
      %v711 = vsel %vm704, %v675, -inf
      %712 = vmax.xlane.f32.xlu0 %v711
      %v713 = vpop.xlane.xlu0 %712
      %v714 = vsel %vm704, %v678, -inf
      %715 = vmax.xlane.f32.xlu0 %v714
      %v716 = vpop.xlane.xlu0 %715
      %v717 = vsel %vm704, %v683, -inf
      %718 = vmax.xlane.f32.xlu0 %v717
      %v719 = vpop.xlane.xlu0 %718
      %v720 = vsel %vm704, %v686, -inf
      %721 = vmax.xlane.f32.xlu0 %v720
      %v722 = vpop.xlane.xlu0 %721
      %v723 = vsel %vm704, %v691, -inf
      %724 = vmax.xlane.f32.xlu0 %v723
      %v725 = vpop.xlane.xlu0 %724
      %v726 = vsel %vm704, %v694, -inf
      %727 = vmax.xlane.f32.xlu0 %v726
      %v728 = vpop.xlane.xlu0 %727
      %vm729 = vcmask 524288
      %v730 = vsel %vm729, %v699, -inf
      %731 = vmax.xlane.f32.xlu0 %v730
      %v732 = vpop.xlane.xlu0 %731
      %v733 = vsub.f32 %v667, %v707
      %v734 = vsub.f32 %v670, %v710
      %v735 = vsub.f32 %v675, %v713
      %v736 = vsub.f32 %v678, %v716
      %v737 = vsub.f32 %v683, %v719
      %v738 = vsub.f32 %v686, %v722
      %v739 = vsub.f32 %v691, %v725
      %v740 = vsub.f32 %v694, %v728
      %v741 = vsub.f32 %v699, %v732
      %v742 = vmul.f32 %v733, 1.442695
      %v743 = vpow.pop %v742
      %v744 = vmul.f32 %v734, 1.442695
      %v745 = vpow.pop %v744
      %v746 = vmul.f32 %v735, 1.442695
      %v747 = vpow.pop %v746
      %v748 = vmul.f32 %v736, 1.442695
      %v749 = vpow.pop %v748
      %v750 = vmul.f32 %v737, 1.442695
      %v751 = vpow.pop %v750
      %v752 = vmul.f32 %v738, 1.442695
      %v753 = vpow.pop %v752
      %v754 = vmul.f32 %v739, 1.442695
      %v755 = vpow.pop %v754
      %v756 = vmul.f32 %v740, 1.442695
      %v757 = vpow.pop %v756
      %v758 = vmul.f32 %v741, 1.442695
      %v759 = vpow.pop %v758
      %v760 = vsel %vm704, %v743, 0.0
      %761 = vadd.xlane.f32.xlu0 %v760
      %v762 = vpop.xlane.xlu0 %761
      %v763 = vsel %vm704, %v745, 0.0
      %764 = vadd.xlane.f32.xlu0 %v763
      %v765 = vpop.xlane.xlu0 %764
      %v766 = vsel %vm704, %v747, 0.0
      %767 = vadd.xlane.f32.xlu0 %v766
      %v768 = vpop.xlane.xlu0 %767
      %v769 = vsel %vm704, %v749, 0.0
      %770 = vadd.xlane.f32.xlu0 %v769
      %v771 = vpop.xlane.xlu0 %770
      %v772 = vsel %vm704, %v751, 0.0
      %773 = vadd.xlane.f32.xlu0 %v772
      %v774 = vpop.xlane.xlu0 %773
      %v775 = vsel %vm704, %v753, 0.0
      %776 = vadd.xlane.f32.xlu0 %v775
      %v777 = vpop.xlane.xlu0 %776
      %v778 = vsel %vm704, %v755, 0.0
      %779 = vadd.xlane.f32.xlu0 %v778
      %v780 = vpop.xlane.xlu0 %779
      %v781 = vsel %vm704, %v757, 0.0
      %782 = vadd.xlane.f32.xlu0 %v781
      %v783 = vpop.xlane.xlu0 %782
      %v784 = vsel %vm729, %v759, 0.0
      %785 = vadd.xlane.f32.xlu0 %v784
      %v786 = vpop.xlane.xlu0 %785
      %v787 = vrcp.pop %v762
      %v788 = vrcp.pop %v765
      %v789 = vrcp.pop %v768
      %v790 = vrcp.pop %v771
      %v791 = vrcp.pop %v774
      %v792 = vrcp.pop %v777
      %v793 = vrcp.pop %v780
      %v794 = vrcp.pop %v783
      %v795 = vrcp.pop %v786
      %v796 = vmul.f32 %v743, %v787
      %v797 = vmul.f32 %v745, %v788
      %v798 = vmul.f32 %v747, %v789
      %v799 = vmul.f32 %v749, %v790
      %v800 = vmul.f32 %v751, %v791
      %v801 = vmul.f32 %v753, %v792
      %v802 = vmul.f32 %v755, %v793
      %v803 = vmul.f32 %v757, %v794
      %v804 = vmul.f32 %v759, %v795
      %v805 = vpack.c.bf16 %v797, %v796
      %v806 = vpack.c.bf16 %v799, %v798
      %v807 = vpack.c.bf16 %v801, %v800
      %v808 = vpack.c.bf16 %v803, %v802
      %v809 = vpack.c.bf16 %v804, %v804
      %v811 = vsel %vm704, %v805, 0
      %v814 = vsel %vm704, %v806, 0
      %v817 = vsel %vm704, %v807, 0
      %v820 = vsel %vm704, %v808, 0
      %v823 = vsel %vm704, %v809, 0
      %vm825 = vcmask 1040384
      %v826 = vsel 0, 4294967295, 65535
      %v827 = vsel %vm825, %v826, 0
      %v829 = vand.u32 %v584, %v827
      %831 = vmatprep.subr.bf16.mxu0 0
      %832 = vmatpush1.bf16.msra.mxu0 0
      %833 = vmatprep.subr.bf16.mxu0 0
      %834 = vmatpush1.bf16.msra.mxu0 0
      %835 = vmatprep.subr.bf16.mxu0 0
      %836 = vmatpush1.bf16.msra.mxu0 0
      %837 = vmatprep.subr.bf16.mxu0 0
      %838 = vmatpush1.bf16.msra.mxu0 %v829
      %839 = vmatprep.subr.bf16.mxu0 0
      %840 = vmatpush1.bf16.msra.mxu0 %v581
      %841 = vmatprep.subr.bf16.mxu0 0
      %842 = vmatpush1.bf16.msra.mxu0 %v578
      %843 = vmatprep.subr.bf16.mxu0 0
      %844 = vmatpush1.bf16.msra.mxu0 %v575
      %845 = vmatprep.subr.bf16.mxu0 0
      %846 = vmatpush1.bf16.msra.mxu0 %v572
      %847 = vmatprep.subr.bf16.mxu0 0
      %848 = vmatpush2.bf16.msra.mxu0 0
      %849 = vmatprep.subr.bf16.mxu0 0
      %850 = vmatpush2.bf16.msra.mxu0 0
      %851 = vmatprep.subr.bf16.mxu0 0
      %852 = vmatpush2.bf16.msra.mxu0 0
      %853 = vmatprep.subr.bf16.mxu0 0
      %854 = vmatpush2.bf16.msra.mxu0 0
      %855 = vmatprep.subr.bf16.mxu0 0
      %856 = vmatpush2.bf16.msra.mxu0 0
      %857 = vmatprep.subr.bf16.mxu0 0
      %858 = vmatpush2.bf16.msra.mxu0 0
      %859 = vmatprep.subr.bf16.mxu0 0
      %860 = vmatpush2.bf16.msra.mxu0 0
      %861 = vmatprep.subr.bf16.mxu0 0
      %862 = vmatpush2.bf16.msra.mxu0 0
      %863 = vmatprep.mubr.bf16.mxu0 0
      %864 = vmatmul.mubr.bf16.gmra.mxu0 %v811
      %v865 = vpop.f32.mrf.mxu0
      %v866 = vadd.f32 0.0, %v865
      %v867 = vpop.f32.mrf.mxu0
      %v868 = vpop.f32.mrf.mxu0
      %v869 = vadd.f32 0.0, %v868
      %v870 = vpop.f32.mrf.mxu0
      %871 = vmatprep.mubr.bf16.mxu0 0
      %872 = vmatmul.mubr.bf16.gmra.mxu0 %v814
      %v873 = vpop.f32.mrf.mxu0
      %v874 = vadd.f32 0.0, %v873
      %v875 = vpop.f32.mrf.mxu0
      %v876 = vpop.f32.mrf.mxu0
      %v877 = vadd.f32 0.0, %v876
      %v878 = vpop.f32.mrf.mxu0
      %879 = vmatprep.mubr.bf16.mxu0 0
      %880 = vmatmul.mubr.bf16.gmra.mxu0 %v817
      %v881 = vpop.f32.mrf.mxu0
      %v882 = vadd.f32 0.0, %v881
      %v883 = vpop.f32.mrf.mxu0
      %v884 = vpop.f32.mrf.mxu0
      %v885 = vadd.f32 0.0, %v884
      %v886 = vpop.f32.mrf.mxu0
      %887 = vmatprep.mubr.bf16.mxu0 0
      %888 = vmatmul.mubr.bf16.gmra.mxu0 %v820
      %v889 = vpop.f32.mrf.mxu0
      %v890 = vadd.f32 0.0, %v889
      %v891 = vpop.f32.mrf.mxu0
      %v892 = vpop.f32.mrf.mxu0
      %v893 = vadd.f32 0.0, %v892
      %v894 = vpop.f32.mrf.mxu0
      %895 = vmatprep.mubr.bf16.mxu0 0
      %896 = vmatmul.mubr.bf16.gmra.mxu0 %v823
      %v897 = vpop.f32.mrf.mxu0
      %v898 = vadd.f32 0.0, %v897
      %v899 = vpop.f32.mrf.mxu0
      %v900 = vpop.f32.mrf.mxu0
      %v901 = vpop.f32.mrf.mxu0
      %902 = vdwg.mxu0
      %v903 = vpack.c.bf16 %v869, %v866
      %v904 = vpack.c.bf16 %v877, %v874
      %v905 = vpack.c.bf16 %v885, %v882
      %v906 = vpack.c.bf16 %v893, %v890
      %v907 = vpack.c.bf16 %v898, %v898
      %913 = vrot.lane.b32.xlu0 %v570, 96
      %v914 = vpop.permute.xlu0 %913
      %915 = vrot.lane.b32.xlu0 %v573, 96
      %v916 = vpop.permute.xlu0 %915
      %917 = vrot.lane.b32.xlu0 %v576, 96
      %v918 = vpop.permute.xlu0 %917
      %919 = vrot.lane.b32.xlu0 %v579, 96
      %v920 = vpop.permute.xlu0 %919
      %921 = vrot.lane.b32.xlu0 %v582, 96
      %v922 = vpop.permute.xlu0 %921
      %928 = vrot.lane.b32.xlu0 %v571, 96
      %v929 = vpop.permute.xlu0 %928
      %930 = vrot.lane.b32.xlu0 %v574, 96
      %v931 = vpop.permute.xlu0 %930
      %932 = vrot.lane.b32.xlu0 %v577, 96
      %v933 = vpop.permute.xlu0 %932
      %934 = vrot.lane.b32.xlu0 %v580, 96
      %v935 = vpop.permute.xlu0 %934
      %936 = vrot.lane.b32.xlu0 %v583, 96
      %v937 = vpop.permute.xlu0 %936
      %v939 = vsel %vm601, %v914, 0
      %v942 = vsel %vm601, %v916, 0
      %v945 = vsel %vm601, %v918, 0
      %v948 = vsel %vm601, %v920, 0
      %v951 = vsel %vm601, %v922, 0
      %v954 = vsel %vm601, %v929, 0
      %v957 = vsel %vm601, %v931, 0
      %v960 = vsel %vm601, %v933, 0
      %v963 = vsel %vm601, %v935, 0
      %v966 = vsel %vm601, %v937, 0
      %968 = vmatprep.subr.bf16.mxu0 0
      %969 = vmatpush1.bf16.xpose.msra.mxu0 0
      %970 = vmatprep.subr.bf16.mxu0 0
      %971 = vmatpush1.bf16.xpose.msra.mxu0 0
      %972 = vmatprep.subr.bf16.mxu0 0
      %973 = vmatpush1.bf16.xpose.msra.mxu0 0
      %974 = vmatprep.subr.bf16.mxu0 0
      %975 = vmatpush1.bf16.xpose.msra.mxu0 %v966
      %976 = vmatprep.subr.bf16.mxu0 0
      %977 = vmatpush1.bf16.xpose.msra.mxu0 %v963
      %978 = vmatprep.subr.bf16.mxu0 0
      %979 = vmatpush1.bf16.xpose.msra.mxu0 %v960
      %980 = vmatprep.subr.bf16.mxu0 0
      %981 = vmatpush1.bf16.xpose.msra.mxu0 %v957
      %982 = vmatprep.subr.bf16.mxu0 0
      %983 = vmatpush1.bf16.xpose.msra.mxu0 %v954
      %984 = vmatprep.subr.bf16.mxu0 0
      %985 = vmatpush2.bf16.xpose.msra.mxu0 0
      %986 = vmatprep.subr.bf16.mxu0 0
      %987 = vmatpush2.bf16.xpose.msra.mxu0 0
      %988 = vmatprep.subr.bf16.mxu0 0
      %989 = vmatpush2.bf16.xpose.msra.mxu0 0
      %990 = vmatprep.subr.bf16.mxu0 0
      %991 = vmatpush2.bf16.xpose.msra.mxu0 0
      %992 = vmatprep.subr.bf16.mxu0 0
      %993 = vmatpush2.bf16.xpose.msra.mxu0 0
      %994 = vmatprep.subr.bf16.mxu0 0
      %995 = vmatpush2.bf16.xpose.msra.mxu0 0
      %996 = vmatprep.subr.bf16.mxu0 0
      %997 = vmatpush2.bf16.xpose.msra.mxu0 0
      %998 = vmatprep.subr.bf16.mxu0 0
      %999 = vmatpush2.bf16.xpose.msra.mxu0 0
      %1000 = vmatprep.mubr.bf16.mxu0 0
      %1001 = vmatmul.mubr.bf16.gmra.mxu0 %v939
      %v1002 = vpop.f32.mrf.mxu0
      %v1003 = vadd.f32 0.0, %v1002
      %v1004 = vpop.f32.mrf.mxu0
      %v1005 = vpop.f32.mrf.mxu0
      %v1006 = vadd.f32 0.0, %v1005
      %v1007 = vpop.f32.mrf.mxu0
      %1008 = vmatprep.mubr.bf16.mxu0 0
      %1009 = vmatmul.mubr.bf16.gmra.mxu0 %v942
      %v1010 = vpop.f32.mrf.mxu0
      %v1011 = vadd.f32 0.0, %v1010
      %v1012 = vpop.f32.mrf.mxu0
      %v1013 = vpop.f32.mrf.mxu0
      %v1014 = vadd.f32 0.0, %v1013
      %v1015 = vpop.f32.mrf.mxu0
      %1016 = vmatprep.mubr.bf16.mxu0 0
      %1017 = vmatmul.mubr.bf16.gmra.mxu0 %v945
      %v1018 = vpop.f32.mrf.mxu0
      %v1019 = vadd.f32 0.0, %v1018
      %v1020 = vpop.f32.mrf.mxu0
      %v1021 = vpop.f32.mrf.mxu0
      %v1022 = vadd.f32 0.0, %v1021
      %v1023 = vpop.f32.mrf.mxu0
      %1024 = vmatprep.mubr.bf16.mxu0 0
      %1025 = vmatmul.mubr.bf16.gmra.mxu0 %v948
      %v1026 = vpop.f32.mrf.mxu0
      %v1027 = vadd.f32 0.0, %v1026
      %v1028 = vpop.f32.mrf.mxu0
      %v1029 = vpop.f32.mrf.mxu0
      %v1030 = vadd.f32 0.0, %v1029
      %v1031 = vpop.f32.mrf.mxu0
      %1032 = vmatprep.mubr.bf16.mxu0 0
      %1033 = vmatmul.mubr.bf16.gmra.mxu0 %v951
      %v1034 = vpop.f32.mrf.mxu0
      %v1035 = vadd.f32 0.0, %v1034
      %v1036 = vpop.f32.mrf.mxu0
      %v1037 = vpop.f32.mrf.mxu0
      %v1038 = vpop.f32.mrf.mxu0
      %1039 = vdwg.mxu0
      %v1040 = vsel %vm704, %v1003, -inf
      %1041 = vmax.xlane.f32.xlu0 %v1040
      %v1042 = vpop.xlane.xlu0 %1041
      %v1043 = vsel %vm704, %v1006, -inf
      %1044 = vmax.xlane.f32.xlu0 %v1043
      %v1045 = vpop.xlane.xlu0 %1044
      %v1046 = vsel %vm704, %v1011, -inf
      %1047 = vmax.xlane.f32.xlu0 %v1046
      %v1048 = vpop.xlane.xlu0 %1047
      %v1049 = vsel %vm704, %v1014, -inf
      %1050 = vmax.xlane.f32.xlu0 %v1049
      %v1051 = vpop.xlane.xlu0 %1050
      %v1052 = vsel %vm704, %v1019, -inf
      %1053 = vmax.xlane.f32.xlu0 %v1052
      %v1054 = vpop.xlane.xlu0 %1053
      %v1055 = vsel %vm704, %v1022, -inf
      %1056 = vmax.xlane.f32.xlu0 %v1055
      %v1057 = vpop.xlane.xlu0 %1056
      %v1058 = vsel %vm704, %v1027, -inf
      %1059 = vmax.xlane.f32.xlu0 %v1058
      %v1060 = vpop.xlane.xlu0 %1059
      %v1061 = vsel %vm704, %v1030, -inf
      %1062 = vmax.xlane.f32.xlu0 %v1061
      %v1063 = vpop.xlane.xlu0 %1062
      %v1064 = vsel %vm729, %v1035, -inf
      %1065 = vmax.xlane.f32.xlu0 %v1064
      %v1066 = vpop.xlane.xlu0 %1065
      %v1067 = vsub.f32 %v1003, %v1042
      %v1068 = vsub.f32 %v1006, %v1045
      %v1069 = vsub.f32 %v1011, %v1048
      %v1070 = vsub.f32 %v1014, %v1051
      %v1071 = vsub.f32 %v1019, %v1054
      %v1072 = vsub.f32 %v1022, %v1057
      %v1073 = vsub.f32 %v1027, %v1060
      %v1074 = vsub.f32 %v1030, %v1063
      %v1075 = vsub.f32 %v1035, %v1066
      %v1076 = vmul.f32 %v1067, 1.442695
      %v1077 = vpow.pop %v1076
      %v1078 = vmul.f32 %v1068, 1.442695
      %v1079 = vpow.pop %v1078
      %v1080 = vmul.f32 %v1069, 1.442695
      %v1081 = vpow.pop %v1080
      %v1082 = vmul.f32 %v1070, 1.442695
      %v1083 = vpow.pop %v1082
      %v1084 = vmul.f32 %v1071, 1.442695
      %v1085 = vpow.pop %v1084
      %v1086 = vmul.f32 %v1072, 1.442695
      %v1087 = vpow.pop %v1086
      %v1088 = vmul.f32 %v1073, 1.442695
      %v1089 = vpow.pop %v1088
      %v1090 = vmul.f32 %v1074, 1.442695
      %v1091 = vpow.pop %v1090
      %v1092 = vmul.f32 %v1075, 1.442695
      %v1093 = vpow.pop %v1092
      %v1094 = vsel %vm704, %v1077, 0.0
      %1095 = vadd.xlane.f32.xlu0 %v1094
      %v1096 = vpop.xlane.xlu0 %1095
      %v1097 = vsel %vm704, %v1079, 0.0
      %1098 = vadd.xlane.f32.xlu0 %v1097
      %v1099 = vpop.xlane.xlu0 %1098
      %v1100 = vsel %vm704, %v1081, 0.0
      %1101 = vadd.xlane.f32.xlu0 %v1100
      %v1102 = vpop.xlane.xlu0 %1101
      %v1103 = vsel %vm704, %v1083, 0.0
      %1104 = vadd.xlane.f32.xlu0 %v1103
      %v1105 = vpop.xlane.xlu0 %1104
      %v1106 = vsel %vm704, %v1085, 0.0
      %1107 = vadd.xlane.f32.xlu0 %v1106
      %v1108 = vpop.xlane.xlu0 %1107
      %v1109 = vsel %vm704, %v1087, 0.0
      %1110 = vadd.xlane.f32.xlu0 %v1109
      %v1111 = vpop.xlane.xlu0 %1110
      %v1112 = vsel %vm704, %v1089, 0.0
      %1113 = vadd.xlane.f32.xlu0 %v1112
      %v1114 = vpop.xlane.xlu0 %1113
      %v1115 = vsel %vm704, %v1091, 0.0
      %1116 = vadd.xlane.f32.xlu0 %v1115
      %v1117 = vpop.xlane.xlu0 %1116
      %v1118 = vsel %vm729, %v1093, 0.0
      %1119 = vadd.xlane.f32.xlu0 %v1118
      %v1120 = vpop.xlane.xlu0 %1119
      %v1121 = vrcp.pop %v1096
      %v1122 = vrcp.pop %v1099
      %v1123 = vrcp.pop %v1102
      %v1124 = vrcp.pop %v1105
      %v1125 = vrcp.pop %v1108
      %v1126 = vrcp.pop %v1111
      %v1127 = vrcp.pop %v1114
      %v1128 = vrcp.pop %v1117
      %v1129 = vrcp.pop %v1120
      %v1130 = vmul.f32 %v1077, %v1121
      %v1131 = vmul.f32 %v1079, %v1122
      %v1132 = vmul.f32 %v1081, %v1123
      %v1133 = vmul.f32 %v1083, %v1124
      %v1134 = vmul.f32 %v1085, %v1125
      %v1135 = vmul.f32 %v1087, %v1126
      %v1136 = vmul.f32 %v1089, %v1127
      %v1137 = vmul.f32 %v1091, %v1128
      %v1138 = vmul.f32 %v1093, %v1129
      %v1139 = vpack.c.bf16 %v1131, %v1130
      %v1140 = vpack.c.bf16 %v1133, %v1132
      %v1141 = vpack.c.bf16 %v1135, %v1134
      %v1142 = vpack.c.bf16 %v1137, %v1136
      %v1143 = vpack.c.bf16 %v1138, %v1138
      %1149 = vrot.lane.b32.xlu0 %v572, 96
      %v1150 = vpop.permute.xlu0 %1149
      %1151 = vrot.lane.b32.xlu0 %v575, 96
      %v1152 = vpop.permute.xlu0 %1151
      %1153 = vrot.lane.b32.xlu0 %v578, 96
      %v1154 = vpop.permute.xlu0 %1153
      %1155 = vrot.lane.b32.xlu0 %v581, 96
      %v1156 = vpop.permute.xlu0 %1155
      %1157 = vrot.lane.b32.xlu0 %v584, 96
      %v1158 = vpop.permute.xlu0 %1157
      %v1164 = vsel %vm704, %v1139, 0
      %v1167 = vsel %vm704, %v1140, 0
      %v1170 = vsel %vm704, %v1141, 0
      %v1173 = vsel %vm704, %v1142, 0
      %v1176 = vsel %vm704, %v1143, 0
      %v1179 = vand.u32 %v1158, %v827
      %1181 = vmatprep.subr.bf16.mxu0 0
      %1182 = vmatpush1.bf16.msra.mxu0 0
      %1183 = vmatprep.subr.bf16.mxu0 0
      %1184 = vmatpush1.bf16.msra.mxu0 0
      %1185 = vmatprep.subr.bf16.mxu0 0
      %1186 = vmatpush1.bf16.msra.mxu0 0
      %1187 = vmatprep.subr.bf16.mxu0 0
      %1188 = vmatpush1.bf16.msra.mxu0 %v1179
      %1189 = vmatprep.subr.bf16.mxu0 0
      %1190 = vmatpush1.bf16.msra.mxu0 %v1156
      %1191 = vmatprep.subr.bf16.mxu0 0
      %1192 = vmatpush1.bf16.msra.mxu0 %v1154
      %1193 = vmatprep.subr.bf16.mxu0 0
      %1194 = vmatpush1.bf16.msra.mxu0 %v1152
      %1195 = vmatprep.subr.bf16.mxu0 0
      %1196 = vmatpush1.bf16.msra.mxu0 %v1150
      %1197 = vmatprep.subr.bf16.mxu0 0
      %1198 = vmatpush2.bf16.msra.mxu0 0
      %1199 = vmatprep.subr.bf16.mxu0 0
      %1200 = vmatpush2.bf16.msra.mxu0 0
      %1201 = vmatprep.subr.bf16.mxu0 0
      %1202 = vmatpush2.bf16.msra.mxu0 0
      %1203 = vmatprep.subr.bf16.mxu0 0
      %1204 = vmatpush2.bf16.msra.mxu0 0
      %1205 = vmatprep.subr.bf16.mxu0 0
      %1206 = vmatpush2.bf16.msra.mxu0 0
      %1207 = vmatprep.subr.bf16.mxu0 0
      %1208 = vmatpush2.bf16.msra.mxu0 0
      %1209 = vmatprep.subr.bf16.mxu0 0
      %1210 = vmatpush2.bf16.msra.mxu0 0
      %1211 = vmatprep.subr.bf16.mxu0 0
      %1212 = vmatpush2.bf16.msra.mxu0 0
      %1213 = vmatprep.mubr.bf16.mxu0 0
      %1214 = vmatmul.mubr.bf16.gmra.mxu0 %v1164
      %v1215 = vpop.f32.mrf.mxu0
      %v1216 = vadd.f32 0.0, %v1215
      %v1217 = vpop.f32.mrf.mxu0
      %v1218 = vpop.f32.mrf.mxu0
      %v1219 = vadd.f32 0.0, %v1218
      %v1220 = vpop.f32.mrf.mxu0
      %1221 = vmatprep.mubr.bf16.mxu0 0
      %1222 = vmatmul.mubr.bf16.gmra.mxu0 %v1167
      %v1223 = vpop.f32.mrf.mxu0
      %v1224 = vadd.f32 0.0, %v1223
      %v1225 = vpop.f32.mrf.mxu0
      %v1226 = vpop.f32.mrf.mxu0
      %v1227 = vadd.f32 0.0, %v1226
      %v1228 = vpop.f32.mrf.mxu0
      %1229 = vmatprep.mubr.bf16.mxu0 0
      %1230 = vmatmul.mubr.bf16.gmra.mxu0 %v1170
      %v1231 = vpop.f32.mrf.mxu0
      %v1232 = vadd.f32 0.0, %v1231
      %v1233 = vpop.f32.mrf.mxu0
      %v1234 = vpop.f32.mrf.mxu0
      %v1235 = vadd.f32 0.0, %v1234
      %v1236 = vpop.f32.mrf.mxu0
      %1237 = vmatprep.mubr.bf16.mxu0 0
      %1238 = vmatmul.mubr.bf16.gmra.mxu0 %v1173
      %v1239 = vpop.f32.mrf.mxu0
      %v1240 = vadd.f32 0.0, %v1239
      %v1241 = vpop.f32.mrf.mxu0
      %v1242 = vpop.f32.mrf.mxu0
      %v1243 = vadd.f32 0.0, %v1242
      %v1244 = vpop.f32.mrf.mxu0
      %1245 = vmatprep.mubr.bf16.mxu0 0
      %1246 = vmatmul.mubr.bf16.gmra.mxu0 %v1176
      %v1247 = vpop.f32.mrf.mxu0
      %v1248 = vadd.f32 0.0, %v1247
      %v1249 = vpop.f32.mrf.mxu0
      %v1250 = vpop.f32.mrf.mxu0
      %v1251 = vpop.f32.mrf.mxu0
      %1252 = vdwg.mxu0
      %v1253 = vpack.c.bf16 %v1219, %v1216
      %v1254 = vpack.c.bf16 %v1227, %v1224
      %v1255 = vpack.c.bf16 %v1235, %v1232
      %v1256 = vpack.c.bf16 %v1243, %v1240
      %v1257 = vpack.c.bf16 %v1248, %v1248
      %v1262 = vunpack.c.l.b16 %v589
      %v1263 = vunpack.c.l.b16 %v590
      %v1264 = vunpack.c.l.b16 %v591
      %v1265 = vunpack.c.l.b16 %v592
      %v1266 = vpack.c.b16 %v1263, %v1262
      %v1267 = vpack.c.b16 %v1265, %v1264
      %v1271 = vsel %vm601, %v1253, 0
      %v1274 = vsel %vm601, %v1254, 0
      %v1277 = vsel %vm601, %v1255, 0
      %v1280 = vsel %vm601, %v1256, 0
      %v1283 = vsel %vm601, %v1257, 0
      %1285 = vmatprep.subr.bf16.mxu0 0
      %1286 = vmatpush1.bf16.msra.mxu0 0
      %1287 = vmatprep.subr.bf16.mxu0 0
      %1288 = vmatpush1.bf16.msra.mxu0 0
      %1289 = vmatprep.subr.bf16.mxu0 0
      %1290 = vmatpush1.bf16.msra.mxu0 0
      %1291 = vmatprep.subr.bf16.mxu0 0
      %1292 = vmatpush1.bf16.msra.mxu0 0
      %1293 = vmatprep.subr.bf16.mxu0 0
      %1294 = vmatpush1.bf16.msra.mxu0 0
      %1295 = vmatprep.subr.bf16.mxu0 0
      %1296 = vmatpush1.bf16.msra.mxu0 0
      %1297 = vmatprep.subr.bf16.mxu0 0
      %1298 = vmatpush1.bf16.msra.mxu0 %v1267
      %1299 = vmatprep.subr.bf16.mxu0 0
      %1300 = vmatpush1.bf16.msra.mxu0 %v1266
      %1301 = vmatprep.subr.bf16.mxu0 0
      %1302 = vmatpush2.bf16.msra.mxu0 0
      %1303 = vmatprep.subr.bf16.mxu0 0
      %1304 = vmatpush2.bf16.msra.mxu0 0
      %1305 = vmatprep.subr.bf16.mxu0 0
      %1306 = vmatpush2.bf16.msra.mxu0 0
      %1307 = vmatprep.subr.bf16.mxu0 0
      %1308 = vmatpush2.bf16.msra.mxu0 0
      %1309 = vmatprep.subr.bf16.mxu0 0
      %1310 = vmatpush2.bf16.msra.mxu0 0
      %1311 = vmatprep.subr.bf16.mxu0 0
      %1312 = vmatpush2.bf16.msra.mxu0 0
      %1313 = vmatprep.subr.bf16.mxu0 0
      %1314 = vmatpush2.bf16.msra.mxu0 0
      %1315 = vmatprep.subr.bf16.mxu0 0
      %1316 = vmatpush2.bf16.msra.mxu0 0
      %1317 = vmatprep.mubr.bf16.mxu0 0
      %1318 = vmatmul.mubr.bf16.gmra.mxu0 %v1271
      %v1319 = vpop.f32.mrf.mxu0
      %v1320 = vadd.f32 0.0, %v1319
      %v1321 = vpop.f32.mrf.mxu0
      %v1322 = vpop.f32.mrf.mxu0
      %v1323 = vadd.f32 0.0, %v1322
      %v1324 = vpop.f32.mrf.mxu0
      %1325 = vmatprep.mubr.bf16.mxu0 0
      %1326 = vmatmul.mubr.bf16.gmra.mxu0 %v1274
      %v1327 = vpop.f32.mrf.mxu0
      %v1328 = vadd.f32 0.0, %v1327
      %v1329 = vpop.f32.mrf.mxu0
      %v1330 = vpop.f32.mrf.mxu0
      %v1331 = vadd.f32 0.0, %v1330
      %v1332 = vpop.f32.mrf.mxu0
      %1333 = vmatprep.mubr.bf16.mxu0 0
      %1334 = vmatmul.mubr.bf16.gmra.mxu0 %v1277
      %v1335 = vpop.f32.mrf.mxu0
      %v1336 = vadd.f32 0.0, %v1335
      %v1337 = vpop.f32.mrf.mxu0
      %v1338 = vpop.f32.mrf.mxu0
      %v1339 = vadd.f32 0.0, %v1338
      %v1340 = vpop.f32.mrf.mxu0
      %1341 = vmatprep.mubr.bf16.mxu0 0
      %1342 = vmatmul.mubr.bf16.gmra.mxu0 %v1280
      %v1343 = vpop.f32.mrf.mxu0
      %v1344 = vadd.f32 0.0, %v1343
      %v1345 = vpop.f32.mrf.mxu0
      %v1346 = vpop.f32.mrf.mxu0
      %v1347 = vadd.f32 0.0, %v1346
      %v1348 = vpop.f32.mrf.mxu0
      %1349 = vmatprep.mubr.bf16.mxu0 0
      %1350 = vmatmul.mubr.bf16.gmra.mxu0 %v1283
      %v1351 = vpop.f32.mrf.mxu0
      %v1352 = vadd.f32 0.0, %v1351
      %v1353 = vpop.f32.mrf.mxu0
      %v1354 = vpop.f32.mrf.mxu0
      %v1355 = vpop.f32.mrf.mxu0
      %1356 = vdwg.mxu0
      %v1361 = vunpack.c.l.b16 %v585
      %v1362 = vunpack.c.l.b16 %v586
      %v1363 = vunpack.c.l.b16 %v587
      %v1364 = vunpack.c.l.b16 %v588
      %v1365 = vpack.c.b16 %v1362, %v1361
      %v1366 = vpack.c.b16 %v1364, %v1363
      %v1370 = vsel %vm601, %v903, 0
      %v1373 = vsel %vm601, %v904, 0
      %v1376 = vsel %vm601, %v905, 0
      %v1379 = vsel %vm601, %v906, 0
      %v1382 = vsel %vm601, %v907, 0
      %1384 = vmatprep.subr.bf16.mxu0 0
      %1385 = vmatpush1.bf16.msra.mxu0 0
      %1386 = vmatprep.subr.bf16.mxu0 0
      %1387 = vmatpush1.bf16.msra.mxu0 0
      %1388 = vmatprep.subr.bf16.mxu0 0
      %1389 = vmatpush1.bf16.msra.mxu0 0
      %1390 = vmatprep.subr.bf16.mxu0 0
      %1391 = vmatpush1.bf16.msra.mxu0 0
      %1392 = vmatprep.subr.bf16.mxu0 0
      %1393 = vmatpush1.bf16.msra.mxu0 0
      %1394 = vmatprep.subr.bf16.mxu0 0
      %1395 = vmatpush1.bf16.msra.mxu0 0
      %1396 = vmatprep.subr.bf16.mxu0 0
      %1397 = vmatpush1.bf16.msra.mxu0 %v1366
      %1398 = vmatprep.subr.bf16.mxu0 0
      %1399 = vmatpush1.bf16.msra.mxu0 %v1365
      %1400 = vmatprep.subr.bf16.mxu0 0
      %1401 = vmatpush2.bf16.msra.mxu0 0
      %1402 = vmatprep.subr.bf16.mxu0 0
      %1403 = vmatpush2.bf16.msra.mxu0 0
      %1404 = vmatprep.subr.bf16.mxu0 0
      %1405 = vmatpush2.bf16.msra.mxu0 0
      %1406 = vmatprep.subr.bf16.mxu0 0
      %1407 = vmatpush2.bf16.msra.mxu0 0
      %1408 = vmatprep.subr.bf16.mxu0 0
      %1409 = vmatpush2.bf16.msra.mxu0 0
      %1410 = vmatprep.subr.bf16.mxu0 0
      %1411 = vmatpush2.bf16.msra.mxu0 0
      %1412 = vmatprep.subr.bf16.mxu0 0
      %1413 = vmatpush2.bf16.msra.mxu0 0
      %1414 = vmatprep.subr.bf16.mxu0 0
      %1415 = vmatpush2.bf16.msra.mxu0 0
      %1416 = vmatprep.mubr.bf16.mxu0 0
      %1417 = vmatmul.mubr.bf16.gmra.mxu0 %v1370
      %v1418 = vpop.f32.mrf.mxu0
      %v1419 = vadd.f32 %v1320, %v1418
      %v1420 = vpop.f32.mrf.mxu0
      %v1421 = vpop.f32.mrf.mxu0
      %v1422 = vadd.f32 %v1323, %v1421
      %v1423 = vpop.f32.mrf.mxu0
      %1424 = vmatprep.mubr.bf16.mxu0 0
      %1425 = vmatmul.mubr.bf16.gmra.mxu0 %v1373
      %v1426 = vpop.f32.mrf.mxu0
      %v1427 = vadd.f32 %v1328, %v1426
      %v1428 = vpop.f32.mrf.mxu0
      %v1429 = vpop.f32.mrf.mxu0
      %v1430 = vadd.f32 %v1331, %v1429
      %v1431 = vpop.f32.mrf.mxu0
      %1432 = vmatprep.mubr.bf16.mxu0 0
      %1433 = vmatmul.mubr.bf16.gmra.mxu0 %v1376
      %v1434 = vpop.f32.mrf.mxu0
      %v1435 = vadd.f32 %v1336, %v1434
      %v1436 = vpop.f32.mrf.mxu0
      %v1437 = vpop.f32.mrf.mxu0
      %v1438 = vadd.f32 %v1339, %v1437
      %v1439 = vpop.f32.mrf.mxu0
      %1440 = vmatprep.mubr.bf16.mxu0 0
      %1441 = vmatmul.mubr.bf16.gmra.mxu0 %v1379
      %v1442 = vpop.f32.mrf.mxu0
      %v1443 = vadd.f32 %v1344, %v1442
      %v1444 = vpop.f32.mrf.mxu0
      %v1445 = vpop.f32.mrf.mxu0
      %v1446 = vadd.f32 %v1347, %v1445
      %v1447 = vpop.f32.mrf.mxu0
      %1448 = vmatprep.mubr.bf16.mxu0 0
      %1449 = vmatmul.mubr.bf16.gmra.mxu0 %v1382
      %v1450 = vpop.f32.mrf.mxu0
      %v1451 = vadd.f32 %v1352, %v1450
      %v1452 = vpop.f32.mrf.mxu0
      %v1453 = vpop.f32.mrf.mxu0
      %v1454 = vpop.f32.mrf.mxu0
      %1455 = vdwg.mxu0
      %1456 = vrot.lane.b32.xlu0 %v570, 64
      %v1457 = vpop.permute.xlu0 %1456
      %1458 = vrot.lane.b32.xlu0 %v573, 64
      %v1459 = vpop.permute.xlu0 %1458
      %1460 = vrot.lane.b32.xlu0 %v576, 64
      %v1461 = vpop.permute.xlu0 %1460
      %1462 = vrot.lane.b32.xlu0 %v579, 64
      %v1463 = vpop.permute.xlu0 %1462
      %1464 = vrot.lane.b32.xlu0 %v582, 64
      %v1465 = vpop.permute.xlu0 %1464
      %1466 = vrot.lane.b32.xlu0 %v571, 64
      %v1467 = vpop.permute.xlu0 %1466
      %1468 = vrot.lane.b32.xlu0 %v574, 64
      %v1469 = vpop.permute.xlu0 %1468
      %1470 = vrot.lane.b32.xlu0 %v577, 64
      %v1471 = vpop.permute.xlu0 %1470
      %1472 = vrot.lane.b32.xlu0 %v580, 64
      %v1473 = vpop.permute.xlu0 %1472
      %1474 = vrot.lane.b32.xlu0 %v583, 64
      %v1475 = vpop.permute.xlu0 %1474
      %v1477 = vsel %vm601, %v1457, 0
      %v1480 = vsel %vm601, %v1459, 0
      %v1483 = vsel %vm601, %v1461, 0
      %v1486 = vsel %vm601, %v1463, 0
      %v1489 = vsel %vm601, %v1465, 0
      %v1492 = vsel %vm601, %v1467, 0
      %v1495 = vsel %vm601, %v1469, 0
      %v1498 = vsel %vm601, %v1471, 0
      %v1501 = vsel %vm601, %v1473, 0
      %v1504 = vsel %vm601, %v1475, 0
      %1506 = vmatprep.subr.bf16.mxu0 0
      %1507 = vmatpush1.bf16.xpose.msra.mxu0 0
      %1508 = vmatprep.subr.bf16.mxu0 0
      %1509 = vmatpush1.bf16.xpose.msra.mxu0 0
      %1510 = vmatprep.subr.bf16.mxu0 0
      %1511 = vmatpush1.bf16.xpose.msra.mxu0 0
      %1512 = vmatprep.subr.bf16.mxu0 0
      %1513 = vmatpush1.bf16.xpose.msra.mxu0 %v1504
      %1514 = vmatprep.subr.bf16.mxu0 0
      %1515 = vmatpush1.bf16.xpose.msra.mxu0 %v1501
      %1516 = vmatprep.subr.bf16.mxu0 0
      %1517 = vmatpush1.bf16.xpose.msra.mxu0 %v1498
      %1518 = vmatprep.subr.bf16.mxu0 0
      %1519 = vmatpush1.bf16.xpose.msra.mxu0 %v1495
      %1520 = vmatprep.subr.bf16.mxu0 0
      %1521 = vmatpush1.bf16.xpose.msra.mxu0 %v1492
      %1522 = vmatprep.subr.bf16.mxu0 0
      %1523 = vmatpush2.bf16.xpose.msra.mxu0 0
      %1524 = vmatprep.subr.bf16.mxu0 0
      %1525 = vmatpush2.bf16.xpose.msra.mxu0 0
      %1526 = vmatprep.subr.bf16.mxu0 0
      %1527 = vmatpush2.bf16.xpose.msra.mxu0 0
      %1528 = vmatprep.subr.bf16.mxu0 0
      %1529 = vmatpush2.bf16.xpose.msra.mxu0 0
      %1530 = vmatprep.subr.bf16.mxu0 0
      %1531 = vmatpush2.bf16.xpose.msra.mxu0 0
      %1532 = vmatprep.subr.bf16.mxu0 0
      %1533 = vmatpush2.bf16.xpose.msra.mxu0 0
      %1534 = vmatprep.subr.bf16.mxu0 0
      %1535 = vmatpush2.bf16.xpose.msra.mxu0 0
      %1536 = vmatprep.subr.bf16.mxu0 0
      %1537 = vmatpush2.bf16.xpose.msra.mxu0 0
      %1538 = vmatprep.mubr.bf16.mxu0 0
      %1539 = vmatmul.mubr.bf16.gmra.mxu0 %v1477
      %v1540 = vpop.f32.mrf.mxu0
      %v1541 = vadd.f32 0.0, %v1540
      %v1542 = vpop.f32.mrf.mxu0
      %v1543 = vpop.f32.mrf.mxu0
      %v1544 = vadd.f32 0.0, %v1543
      %v1545 = vpop.f32.mrf.mxu0
      %1546 = vmatprep.mubr.bf16.mxu0 0
      %1547 = vmatmul.mubr.bf16.gmra.mxu0 %v1480
      %v1548 = vpop.f32.mrf.mxu0
      %v1549 = vadd.f32 0.0, %v1548
      %v1550 = vpop.f32.mrf.mxu0
      %v1551 = vpop.f32.mrf.mxu0
      %v1552 = vadd.f32 0.0, %v1551
      %v1553 = vpop.f32.mrf.mxu0
      %1554 = vmatprep.mubr.bf16.mxu0 0
      %1555 = vmatmul.mubr.bf16.gmra.mxu0 %v1483
      %v1556 = vpop.f32.mrf.mxu0
      %v1557 = vadd.f32 0.0, %v1556
      %v1558 = vpop.f32.mrf.mxu0
      %v1559 = vpop.f32.mrf.mxu0
      %v1560 = vadd.f32 0.0, %v1559
      %v1561 = vpop.f32.mrf.mxu0
      %1562 = vmatprep.mubr.bf16.mxu0 0
      %1563 = vmatmul.mubr.bf16.gmra.mxu0 %v1486
      %v1564 = vpop.f32.mrf.mxu0
      %v1565 = vadd.f32 0.0, %v1564
      %v1566 = vpop.f32.mrf.mxu0
      %v1567 = vpop.f32.mrf.mxu0
      %v1568 = vadd.f32 0.0, %v1567
      %v1569 = vpop.f32.mrf.mxu0
      %1570 = vmatprep.mubr.bf16.mxu0 0
      %1571 = vmatmul.mubr.bf16.gmra.mxu0 %v1489
      %v1572 = vpop.f32.mrf.mxu0
      %v1573 = vadd.f32 0.0, %v1572
      %v1574 = vpop.f32.mrf.mxu0
      %v1575 = vpop.f32.mrf.mxu0
      %v1576 = vpop.f32.mrf.mxu0
      %1577 = vdwg.mxu0
      %v1578 = vsel %vm704, %v1541, -inf
      %1579 = vmax.xlane.f32.xlu0 %v1578
      %v1580 = vpop.xlane.xlu0 %1579
      %v1581 = vsel %vm704, %v1544, -inf
      %1582 = vmax.xlane.f32.xlu0 %v1581
      %v1583 = vpop.xlane.xlu0 %1582
      %v1584 = vsel %vm704, %v1549, -inf
      %1585 = vmax.xlane.f32.xlu0 %v1584
      %v1586 = vpop.xlane.xlu0 %1585
      %v1587 = vsel %vm704, %v1552, -inf
      %1588 = vmax.xlane.f32.xlu0 %v1587
      %v1589 = vpop.xlane.xlu0 %1588
      %v1590 = vsel %vm704, %v1557, -inf
      %1591 = vmax.xlane.f32.xlu0 %v1590
      %v1592 = vpop.xlane.xlu0 %1591
      %v1593 = vsel %vm704, %v1560, -inf
      %1594 = vmax.xlane.f32.xlu0 %v1593
      %v1595 = vpop.xlane.xlu0 %1594
      %v1596 = vsel %vm704, %v1565, -inf
      %1597 = vmax.xlane.f32.xlu0 %v1596
      %v1598 = vpop.xlane.xlu0 %1597
      %v1599 = vsel %vm704, %v1568, -inf
      %1600 = vmax.xlane.f32.xlu0 %v1599
      %v1601 = vpop.xlane.xlu0 %1600
      %v1602 = vsel %vm729, %v1573, -inf
      %1603 = vmax.xlane.f32.xlu0 %v1602
      %v1604 = vpop.xlane.xlu0 %1603
      %v1605 = vsub.f32 %v1541, %v1580
      %v1606 = vsub.f32 %v1544, %v1583
      %v1607 = vsub.f32 %v1549, %v1586
      %v1608 = vsub.f32 %v1552, %v1589
      %v1609 = vsub.f32 %v1557, %v1592
      %v1610 = vsub.f32 %v1560, %v1595
      %v1611 = vsub.f32 %v1565, %v1598
      %v1612 = vsub.f32 %v1568, %v1601
      %v1613 = vsub.f32 %v1573, %v1604
      %v1614 = vmul.f32 %v1605, 1.442695
      %v1615 = vpow.pop %v1614
      %v1616 = vmul.f32 %v1606, 1.442695
      %v1617 = vpow.pop %v1616
      %v1618 = vmul.f32 %v1607, 1.442695
      %v1619 = vpow.pop %v1618
      %v1620 = vmul.f32 %v1608, 1.442695
      %v1621 = vpow.pop %v1620
      %v1622 = vmul.f32 %v1609, 1.442695
      %v1623 = vpow.pop %v1622
      %v1624 = vmul.f32 %v1610, 1.442695
      %v1625 = vpow.pop %v1624
      %v1626 = vmul.f32 %v1611, 1.442695
      %v1627 = vpow.pop %v1626
      %v1628 = vmul.f32 %v1612, 1.442695
      %v1629 = vpow.pop %v1628
      %v1630 = vmul.f32 %v1613, 1.442695
      %v1631 = vpow.pop %v1630
      %v1632 = vsel %vm704, %v1615, 0.0
      %1633 = vadd.xlane.f32.xlu0 %v1632
      %v1634 = vpop.xlane.xlu0 %1633
      %v1635 = vsel %vm704, %v1617, 0.0
      %1636 = vadd.xlane.f32.xlu0 %v1635
      %v1637 = vpop.xlane.xlu0 %1636
      %v1638 = vsel %vm704, %v1619, 0.0
      %1639 = vadd.xlane.f32.xlu0 %v1638
      %v1640 = vpop.xlane.xlu0 %1639
      %v1641 = vsel %vm704, %v1621, 0.0
      %1642 = vadd.xlane.f32.xlu0 %v1641
      %v1643 = vpop.xlane.xlu0 %1642
      %v1644 = vsel %vm704, %v1623, 0.0
      %1645 = vadd.xlane.f32.xlu0 %v1644
      %v1646 = vpop.xlane.xlu0 %1645
      %v1647 = vsel %vm704, %v1625, 0.0
      %1648 = vadd.xlane.f32.xlu0 %v1647
      %v1649 = vpop.xlane.xlu0 %1648
      %v1650 = vsel %vm704, %v1627, 0.0
      %1651 = vadd.xlane.f32.xlu0 %v1650
      %v1652 = vpop.xlane.xlu0 %1651
      %v1653 = vsel %vm704, %v1629, 0.0
      %1654 = vadd.xlane.f32.xlu0 %v1653
      %v1655 = vpop.xlane.xlu0 %1654
      %v1656 = vsel %vm729, %v1631, 0.0
      %1657 = vadd.xlane.f32.xlu0 %v1656
      %v1658 = vpop.xlane.xlu0 %1657
      %v1659 = vrcp.pop %v1634
      %v1660 = vrcp.pop %v1637
      %v1661 = vrcp.pop %v1640
      %v1662 = vrcp.pop %v1643
      %v1663 = vrcp.pop %v1646
      %v1664 = vrcp.pop %v1649
      %v1665 = vrcp.pop %v1652
      %v1666 = vrcp.pop %v1655
      %v1667 = vrcp.pop %v1658
      %v1668 = vmul.f32 %v1615, %v1659
      %v1669 = vmul.f32 %v1617, %v1660
      %v1670 = vmul.f32 %v1619, %v1661
      %v1671 = vmul.f32 %v1621, %v1662
      %v1672 = vmul.f32 %v1623, %v1663
      %v1673 = vmul.f32 %v1625, %v1664
      %v1674 = vmul.f32 %v1627, %v1665
      %v1675 = vmul.f32 %v1629, %v1666
      %v1676 = vmul.f32 %v1631, %v1667
      %v1677 = vpack.c.bf16 %v1669, %v1668
      %v1678 = vpack.c.bf16 %v1671, %v1670
      %v1679 = vpack.c.bf16 %v1673, %v1672
      %v1680 = vpack.c.bf16 %v1675, %v1674
      %v1681 = vpack.c.bf16 %v1676, %v1676
      %1682 = vrot.lane.b32.xlu0 %v572, 64
      %v1683 = vpop.permute.xlu0 %1682
      %1684 = vrot.lane.b32.xlu0 %v575, 64
      %v1685 = vpop.permute.xlu0 %1684
      %1686 = vrot.lane.b32.xlu0 %v578, 64
      %v1687 = vpop.permute.xlu0 %1686
      %1688 = vrot.lane.b32.xlu0 %v581, 64
      %v1689 = vpop.permute.xlu0 %1688
      %1690 = vrot.lane.b32.xlu0 %v584, 64
      %v1691 = vpop.permute.xlu0 %1690
      %v1697 = vsel %vm704, %v1677, 0
      %v1700 = vsel %vm704, %v1678, 0
      %v1703 = vsel %vm704, %v1679, 0
      %v1706 = vsel %vm704, %v1680, 0
      %v1709 = vsel %vm704, %v1681, 0
      %v1712 = vand.u32 %v1691, %v827
      %1714 = vmatprep.subr.bf16.mxu0 0
      %1715 = vmatpush1.bf16.msra.mxu0 0
      %1716 = vmatprep.subr.bf16.mxu0 0
      %1717 = vmatpush1.bf16.msra.mxu0 0
      %1718 = vmatprep.subr.bf16.mxu0 0
      %1719 = vmatpush1.bf16.msra.mxu0 0
      %1720 = vmatprep.subr.bf16.mxu0 0
      %1721 = vmatpush1.bf16.msra.mxu0 %v1712
      %1722 = vmatprep.subr.bf16.mxu0 0
      %1723 = vmatpush1.bf16.msra.mxu0 %v1689
      %1724 = vmatprep.subr.bf16.mxu0 0
      %1725 = vmatpush1.bf16.msra.mxu0 %v1687
      %1726 = vmatprep.subr.bf16.mxu0 0
      %1727 = vmatpush1.bf16.msra.mxu0 %v1685
      %1728 = vmatprep.subr.bf16.mxu0 0
      %1729 = vmatpush1.bf16.msra.mxu0 %v1683
      %1730 = vmatprep.subr.bf16.mxu0 0
      %1731 = vmatpush2.bf16.msra.mxu0 0
      %1732 = vmatprep.subr.bf16.mxu0 0
      %1733 = vmatpush2.bf16.msra.mxu0 0
      %1734 = vmatprep.subr.bf16.mxu0 0
      %1735 = vmatpush2.bf16.msra.mxu0 0
      %1736 = vmatprep.subr.bf16.mxu0 0
      %1737 = vmatpush2.bf16.msra.mxu0 0
      %1738 = vmatprep.subr.bf16.mxu0 0
      %1739 = vmatpush2.bf16.msra.mxu0 0
      %1740 = vmatprep.subr.bf16.mxu0 0
      %1741 = vmatpush2.bf16.msra.mxu0 0
      %1742 = vmatprep.subr.bf16.mxu0 0
      %1743 = vmatpush2.bf16.msra.mxu0 0
      %1744 = vmatprep.subr.bf16.mxu0 0
      %1745 = vmatpush2.bf16.msra.mxu0 0
      %1746 = vmatprep.mubr.bf16.mxu0 0
      %1747 = vmatmul.mubr.bf16.gmra.mxu0 %v1697
      %v1748 = vpop.f32.mrf.mxu0
      %v1749 = vadd.f32 0.0, %v1748
      %v1750 = vpop.f32.mrf.mxu0
      %v1751 = vpop.f32.mrf.mxu0
      %v1752 = vadd.f32 0.0, %v1751
      %v1753 = vpop.f32.mrf.mxu0
      %1754 = vmatprep.mubr.bf16.mxu0 0
      %1755 = vmatmul.mubr.bf16.gmra.mxu0 %v1700
      %v1756 = vpop.f32.mrf.mxu0
      %v1757 = vadd.f32 0.0, %v1756
      %v1758 = vpop.f32.mrf.mxu0
      %v1759 = vpop.f32.mrf.mxu0
      %v1760 = vadd.f32 0.0, %v1759
      %v1761 = vpop.f32.mrf.mxu0
      %1762 = vmatprep.mubr.bf16.mxu0 0
      %1763 = vmatmul.mubr.bf16.gmra.mxu0 %v1703
      %v1764 = vpop.f32.mrf.mxu0
      %v1765 = vadd.f32 0.0, %v1764
      %v1766 = vpop.f32.mrf.mxu0
      %v1767 = vpop.f32.mrf.mxu0
      %v1768 = vadd.f32 0.0, %v1767
      %v1769 = vpop.f32.mrf.mxu0
      %1770 = vmatprep.mubr.bf16.mxu0 0
      %1771 = vmatmul.mubr.bf16.gmra.mxu0 %v1706
      %v1772 = vpop.f32.mrf.mxu0
      %v1773 = vadd.f32 0.0, %v1772
      %v1774 = vpop.f32.mrf.mxu0
      %v1775 = vpop.f32.mrf.mxu0
      %v1776 = vadd.f32 0.0, %v1775
      %v1777 = vpop.f32.mrf.mxu0
      %1778 = vmatprep.mubr.bf16.mxu0 0
      %1779 = vmatmul.mubr.bf16.gmra.mxu0 %v1709
      %v1780 = vpop.f32.mrf.mxu0
      %v1781 = vadd.f32 0.0, %v1780
      %v1782 = vpop.f32.mrf.mxu0
      %v1783 = vpop.f32.mrf.mxu0
      %v1784 = vpop.f32.mrf.mxu0
      %1785 = vdwg.mxu0
      %v1786 = vpack.c.bf16 %v1752, %v1749
      %v1787 = vpack.c.bf16 %v1760, %v1757
      %v1788 = vpack.c.bf16 %v1768, %v1765
      %v1789 = vpack.c.bf16 %v1776, %v1773
      %v1790 = vpack.c.bf16 %v1781, %v1781
      %v1795 = vunpack.c.l.b16 %v593
      %v1796 = vunpack.c.l.b16 %v594
      %v1797 = vunpack.c.l.b16 %v595
      %v1798 = vunpack.c.l.b16 %v596
      %v1799 = vpack.c.b16 %v1796, %v1795
      %v1800 = vpack.c.b16 %v1798, %v1797
      %v1804 = vsel %vm601, %v1786, 0
      %v1807 = vsel %vm601, %v1787, 0
      %v1810 = vsel %vm601, %v1788, 0
      %v1813 = vsel %vm601, %v1789, 0
      %v1816 = vsel %vm601, %v1790, 0
      %1818 = vmatprep.subr.bf16.mxu0 0
      %1819 = vmatpush1.bf16.msra.mxu0 0
      %1820 = vmatprep.subr.bf16.mxu0 0
      %1821 = vmatpush1.bf16.msra.mxu0 0
      %1822 = vmatprep.subr.bf16.mxu0 0
      %1823 = vmatpush1.bf16.msra.mxu0 0
      %1824 = vmatprep.subr.bf16.mxu0 0
      %1825 = vmatpush1.bf16.msra.mxu0 0
      %1826 = vmatprep.subr.bf16.mxu0 0
      %1827 = vmatpush1.bf16.msra.mxu0 0
      %1828 = vmatprep.subr.bf16.mxu0 0
      %1829 = vmatpush1.bf16.msra.mxu0 0
      %1830 = vmatprep.subr.bf16.mxu0 0
      %1831 = vmatpush1.bf16.msra.mxu0 %v1800
      %1832 = vmatprep.subr.bf16.mxu0 0
      %1833 = vmatpush1.bf16.msra.mxu0 %v1799
      %1834 = vmatprep.subr.bf16.mxu0 0
      %1835 = vmatpush2.bf16.msra.mxu0 0
      %1836 = vmatprep.subr.bf16.mxu0 0
      %1837 = vmatpush2.bf16.msra.mxu0 0
      %1838 = vmatprep.subr.bf16.mxu0 0
      %1839 = vmatpush2.bf16.msra.mxu0 0
      %1840 = vmatprep.subr.bf16.mxu0 0
      %1841 = vmatpush2.bf16.msra.mxu0 0
      %1842 = vmatprep.subr.bf16.mxu0 0
      %1843 = vmatpush2.bf16.msra.mxu0 0
      %1844 = vmatprep.subr.bf16.mxu0 0
      %1845 = vmatpush2.bf16.msra.mxu0 0
      %1846 = vmatprep.subr.bf16.mxu0 0
      %1847 = vmatpush2.bf16.msra.mxu0 0
      %1848 = vmatprep.subr.bf16.mxu0 0
      %1849 = vmatpush2.bf16.msra.mxu0 0
      %1850 = vmatprep.mubr.bf16.mxu0 0
      %1851 = vmatmul.mubr.bf16.gmra.mxu0 %v1804
      %v1852 = vpop.f32.mrf.mxu0
      %v1853 = vadd.f32 0.0, %v1852
      %v1854 = vpop.f32.mrf.mxu0
      %v1855 = vpop.f32.mrf.mxu0
      %v1856 = vadd.f32 0.0, %v1855
      %v1857 = vpop.f32.mrf.mxu0
      %1858 = vmatprep.mubr.bf16.mxu0 0
      %1859 = vmatmul.mubr.bf16.gmra.mxu0 %v1807
      %v1860 = vpop.f32.mrf.mxu0
      %v1861 = vadd.f32 0.0, %v1860
      %v1862 = vpop.f32.mrf.mxu0
      %v1863 = vpop.f32.mrf.mxu0
      %v1864 = vadd.f32 0.0, %v1863
      %v1865 = vpop.f32.mrf.mxu0
      %1866 = vmatprep.mubr.bf16.mxu0 0
      %1867 = vmatmul.mubr.bf16.gmra.mxu0 %v1810
      %v1868 = vpop.f32.mrf.mxu0
      %v1869 = vadd.f32 0.0, %v1868
      %v1870 = vpop.f32.mrf.mxu0
      %v1871 = vpop.f32.mrf.mxu0
      %v1872 = vadd.f32 0.0, %v1871
      %v1873 = vpop.f32.mrf.mxu0
      %1874 = vmatprep.mubr.bf16.mxu0 0
      %1875 = vmatmul.mubr.bf16.gmra.mxu0 %v1813
      %v1876 = vpop.f32.mrf.mxu0
      %v1877 = vadd.f32 0.0, %v1876
      %v1878 = vpop.f32.mrf.mxu0
      %v1879 = vpop.f32.mrf.mxu0
      %v1880 = vadd.f32 0.0, %v1879
      %v1881 = vpop.f32.mrf.mxu0
      %1882 = vmatprep.mubr.bf16.mxu0 0
      %1883 = vmatmul.mubr.bf16.gmra.mxu0 %v1816
      %v1884 = vpop.f32.mrf.mxu0
      %v1885 = vadd.f32 0.0, %v1884
      %v1886 = vpop.f32.mrf.mxu0
      %v1887 = vpop.f32.mrf.mxu0
      %v1888 = vpop.f32.mrf.mxu0
      %1889 = vdwg.mxu0
      %v1890 = vadd.f32 %v1419, %v1853
      %v1891 = vadd.f32 %v1422, %v1856
      %v1892 = vadd.f32 %v1427, %v1861
      %v1893 = vadd.f32 %v1430, %v1864
      %v1894 = vadd.f32 %v1435, %v1869
      %v1895 = vadd.f32 %v1438, %v1872
      %v1896 = vadd.f32 %v1443, %v1877
      %v1897 = vadd.f32 %v1446, %v1880
      %v1898 = vadd.f32 %v1451, %v1885
      %1899 = vrot.lane.b32.xlu0 %v570, 32
      %v1900 = vpop.permute.xlu0 %1899
      %1901 = vrot.lane.b32.xlu0 %v573, 32
      %v1902 = vpop.permute.xlu0 %1901
      %1903 = vrot.lane.b32.xlu0 %v576, 32
      %v1904 = vpop.permute.xlu0 %1903
      %1905 = vrot.lane.b32.xlu0 %v579, 32
      %v1906 = vpop.permute.xlu0 %1905
      %1907 = vrot.lane.b32.xlu0 %v582, 32
      %v1908 = vpop.permute.xlu0 %1907
      %1909 = vrot.lane.b32.xlu0 %v571, 32
      %v1910 = vpop.permute.xlu0 %1909
      %1911 = vrot.lane.b32.xlu0 %v574, 32
      %v1912 = vpop.permute.xlu0 %1911
      %1913 = vrot.lane.b32.xlu0 %v577, 32
      %v1914 = vpop.permute.xlu0 %1913
      %1915 = vrot.lane.b32.xlu0 %v580, 32
      %v1916 = vpop.permute.xlu0 %1915
      %1917 = vrot.lane.b32.xlu0 %v583, 32
      %v1918 = vpop.permute.xlu0 %1917
      %v1920 = vsel %vm601, %v1900, 0
      %v1923 = vsel %vm601, %v1902, 0
      %v1926 = vsel %vm601, %v1904, 0
      %v1929 = vsel %vm601, %v1906, 0
      %v1932 = vsel %vm601, %v1908, 0
      %v1935 = vsel %vm601, %v1910, 0
      %v1938 = vsel %vm601, %v1912, 0
      %v1941 = vsel %vm601, %v1914, 0
      %v1944 = vsel %vm601, %v1916, 0
      %v1947 = vsel %vm601, %v1918, 0
      %1949 = vmatprep.subr.bf16.mxu0 0
      %1950 = vmatpush1.bf16.xpose.msra.mxu0 0
      %1951 = vmatprep.subr.bf16.mxu0 0
      %1952 = vmatpush1.bf16.xpose.msra.mxu0 0
      %1953 = vmatprep.subr.bf16.mxu0 0
      %1954 = vmatpush1.bf16.xpose.msra.mxu0 0
      %1955 = vmatprep.subr.bf16.mxu0 0
      %1956 = vmatpush1.bf16.xpose.msra.mxu0 %v1947
      %1957 = vmatprep.subr.bf16.mxu0 0
      %1958 = vmatpush1.bf16.xpose.msra.mxu0 %v1944
      %1959 = vmatprep.subr.bf16.mxu0 0
      %1960 = vmatpush1.bf16.xpose.msra.mxu0 %v1941
      %1961 = vmatprep.subr.bf16.mxu0 0
      %1962 = vmatpush1.bf16.xpose.msra.mxu0 %v1938
      %1963 = vmatprep.subr.bf16.mxu0 0
      %1964 = vmatpush1.bf16.xpose.msra.mxu0 %v1935
      %1965 = vmatprep.subr.bf16.mxu0 0
      %1966 = vmatpush2.bf16.xpose.msra.mxu0 0
      %1967 = vmatprep.subr.bf16.mxu0 0
      %1968 = vmatpush2.bf16.xpose.msra.mxu0 0
      %1969 = vmatprep.subr.bf16.mxu0 0
      %1970 = vmatpush2.bf16.xpose.msra.mxu0 0
      %1971 = vmatprep.subr.bf16.mxu0 0
      %1972 = vmatpush2.bf16.xpose.msra.mxu0 0
      %1973 = vmatprep.subr.bf16.mxu0 0
      %1974 = vmatpush2.bf16.xpose.msra.mxu0 0
      %1975 = vmatprep.subr.bf16.mxu0 0
      %1976 = vmatpush2.bf16.xpose.msra.mxu0 0
      %1977 = vmatprep.subr.bf16.mxu0 0
      %1978 = vmatpush2.bf16.xpose.msra.mxu0 0
      %1979 = vmatprep.subr.bf16.mxu0 0
      %1980 = vmatpush2.bf16.xpose.msra.mxu0 0
      %1981 = vmatprep.mubr.bf16.mxu0 0
      %1982 = vmatmul.mubr.bf16.gmra.mxu0 %v1920
      %v1983 = vpop.f32.mrf.mxu0
      %v1984 = vadd.f32 0.0, %v1983
      %v1985 = vpop.f32.mrf.mxu0
      %v1986 = vpop.f32.mrf.mxu0
      %v1987 = vadd.f32 0.0, %v1986
      %v1988 = vpop.f32.mrf.mxu0
      %1989 = vmatprep.mubr.bf16.mxu0 0
      %1990 = vmatmul.mubr.bf16.gmra.mxu0 %v1923
      %v1991 = vpop.f32.mrf.mxu0
      %v1992 = vadd.f32 0.0, %v1991
      %v1993 = vpop.f32.mrf.mxu0
      %v1994 = vpop.f32.mrf.mxu0
      %v1995 = vadd.f32 0.0, %v1994
      %v1996 = vpop.f32.mrf.mxu0
      %1997 = vmatprep.mubr.bf16.mxu0 0
      %1998 = vmatmul.mubr.bf16.gmra.mxu0 %v1926
      %v1999 = vpop.f32.mrf.mxu0
      %v2000 = vadd.f32 0.0, %v1999
      %v2001 = vpop.f32.mrf.mxu0
      %v2002 = vpop.f32.mrf.mxu0
      %v2003 = vadd.f32 0.0, %v2002
      %v2004 = vpop.f32.mrf.mxu0
      %2005 = vmatprep.mubr.bf16.mxu0 0
      %2006 = vmatmul.mubr.bf16.gmra.mxu0 %v1929
      %v2007 = vpop.f32.mrf.mxu0
      %v2008 = vadd.f32 0.0, %v2007
      %v2009 = vpop.f32.mrf.mxu0
      %v2010 = vpop.f32.mrf.mxu0
      %v2011 = vadd.f32 0.0, %v2010
      %v2012 = vpop.f32.mrf.mxu0
      %2013 = vmatprep.mubr.bf16.mxu0 0
      %2014 = vmatmul.mubr.bf16.gmra.mxu0 %v1932
      %v2015 = vpop.f32.mrf.mxu0
      %v2016 = vadd.f32 0.0, %v2015
      %v2017 = vpop.f32.mrf.mxu0
      %v2018 = vpop.f32.mrf.mxu0
      %v2019 = vpop.f32.mrf.mxu0
      %2020 = vdwg.mxu0
      %v2021 = vsel %vm704, %v1984, -inf
      %2022 = vmax.xlane.f32.xlu0 %v2021
      %v2023 = vpop.xlane.xlu0 %2022
      %v2024 = vsel %vm704, %v1987, -inf
      %2025 = vmax.xlane.f32.xlu0 %v2024
      %v2026 = vpop.xlane.xlu0 %2025
      %v2027 = vsel %vm704, %v1992, -inf
      %2028 = vmax.xlane.f32.xlu0 %v2027
      %v2029 = vpop.xlane.xlu0 %2028
      %v2030 = vsel %vm704, %v1995, -inf
      %2031 = vmax.xlane.f32.xlu0 %v2030
      %v2032 = vpop.xlane.xlu0 %2031
      %v2033 = vsel %vm704, %v2000, -inf
      %2034 = vmax.xlane.f32.xlu0 %v2033
      %v2035 = vpop.xlane.xlu0 %2034
      %v2036 = vsel %vm704, %v2003, -inf
      %2037 = vmax.xlane.f32.xlu0 %v2036
      %v2038 = vpop.xlane.xlu0 %2037
      %v2039 = vsel %vm704, %v2008, -inf
      %2040 = vmax.xlane.f32.xlu0 %v2039
      %v2041 = vpop.xlane.xlu0 %2040
      %v2042 = vsel %vm704, %v2011, -inf
      %2043 = vmax.xlane.f32.xlu0 %v2042
      %v2044 = vpop.xlane.xlu0 %2043
      %v2045 = vsel %vm729, %v2016, -inf
      %2046 = vmax.xlane.f32.xlu0 %v2045
      %v2047 = vpop.xlane.xlu0 %2046
      %v2048 = vsub.f32 %v1984, %v2023
      %v2049 = vsub.f32 %v1987, %v2026
      %v2050 = vsub.f32 %v1992, %v2029
      %v2051 = vsub.f32 %v1995, %v2032
      %v2052 = vsub.f32 %v2000, %v2035
      %v2053 = vsub.f32 %v2003, %v2038
      %v2054 = vsub.f32 %v2008, %v2041
      %v2055 = vsub.f32 %v2011, %v2044
      %v2056 = vsub.f32 %v2016, %v2047
      %v2057 = vmul.f32 %v2048, 1.442695
      %v2058 = vpow.pop %v2057
      %v2059 = vmul.f32 %v2049, 1.442695
      %v2060 = vpow.pop %v2059
      %v2061 = vmul.f32 %v2050, 1.442695
      %v2062 = vpow.pop %v2061
      %v2063 = vmul.f32 %v2051, 1.442695
      %v2064 = vpow.pop %v2063
      %v2065 = vmul.f32 %v2052, 1.442695
      %v2066 = vpow.pop %v2065
      %v2067 = vmul.f32 %v2053, 1.442695
      %v2068 = vpow.pop %v2067
      %v2069 = vmul.f32 %v2054, 1.442695
      %v2070 = vpow.pop %v2069
      %v2071 = vmul.f32 %v2055, 1.442695
      %v2072 = vpow.pop %v2071
      %v2073 = vmul.f32 %v2056, 1.442695
      %v2074 = vpow.pop %v2073
      %v2075 = vsel %vm704, %v2058, 0.0
      %2076 = vadd.xlane.f32.xlu0 %v2075
      %v2077 = vpop.xlane.xlu0 %2076
      %v2078 = vsel %vm704, %v2060, 0.0
      %2079 = vadd.xlane.f32.xlu0 %v2078
      %v2080 = vpop.xlane.xlu0 %2079
      %v2081 = vsel %vm704, %v2062, 0.0
      %2082 = vadd.xlane.f32.xlu0 %v2081
      %v2083 = vpop.xlane.xlu0 %2082
      %v2084 = vsel %vm704, %v2064, 0.0
      %2085 = vadd.xlane.f32.xlu0 %v2084
      %v2086 = vpop.xlane.xlu0 %2085
      %v2087 = vsel %vm704, %v2066, 0.0
      %2088 = vadd.xlane.f32.xlu0 %v2087
      %v2089 = vpop.xlane.xlu0 %2088
      %v2090 = vsel %vm704, %v2068, 0.0
      %2091 = vadd.xlane.f32.xlu0 %v2090
      %v2092 = vpop.xlane.xlu0 %2091
      %v2093 = vsel %vm704, %v2070, 0.0
      %2094 = vadd.xlane.f32.xlu0 %v2093
      %v2095 = vpop.xlane.xlu0 %2094
      %v2096 = vsel %vm704, %v2072, 0.0
      %2097 = vadd.xlane.f32.xlu0 %v2096
      %v2098 = vpop.xlane.xlu0 %2097
      %v2099 = vsel %vm729, %v2074, 0.0
      %2100 = vadd.xlane.f32.xlu0 %v2099
      %v2101 = vpop.xlane.xlu0 %2100
      %v2102 = vrcp.pop %v2077
      %v2103 = vrcp.pop %v2080
      %v2104 = vrcp.pop %v2083
      %v2105 = vrcp.pop %v2086
      %v2106 = vrcp.pop %v2089
      %v2107 = vrcp.pop %v2092
      %v2108 = vrcp.pop %v2095
      %v2109 = vrcp.pop %v2098
      %v2110 = vrcp.pop %v2101
      %v2111 = vmul.f32 %v2058, %v2102
      %v2112 = vmul.f32 %v2060, %v2103
      %v2113 = vmul.f32 %v2062, %v2104
      %v2114 = vmul.f32 %v2064, %v2105
      %v2115 = vmul.f32 %v2066, %v2106
      %v2116 = vmul.f32 %v2068, %v2107
      %v2117 = vmul.f32 %v2070, %v2108
      %v2118 = vmul.f32 %v2072, %v2109
      %v2119 = vmul.f32 %v2074, %v2110
      %v2120 = vpack.c.bf16 %v2112, %v2111
      %v2121 = vpack.c.bf16 %v2114, %v2113
      %v2122 = vpack.c.bf16 %v2116, %v2115
      %v2123 = vpack.c.bf16 %v2118, %v2117
      %v2124 = vpack.c.bf16 %v2119, %v2119
      %2125 = vrot.lane.b32.xlu0 %v572, 32
      %v2126 = vpop.permute.xlu0 %2125
      %2127 = vrot.lane.b32.xlu0 %v575, 32
      %v2128 = vpop.permute.xlu0 %2127
      %2129 = vrot.lane.b32.xlu0 %v578, 32
      %v2130 = vpop.permute.xlu0 %2129
      %2131 = vrot.lane.b32.xlu0 %v581, 32
      %v2132 = vpop.permute.xlu0 %2131
      %2133 = vrot.lane.b32.xlu0 %v584, 32
      %v2134 = vpop.permute.xlu0 %2133
      %v2140 = vsel %vm704, %v2120, 0
      %v2143 = vsel %vm704, %v2121, 0
      %v2146 = vsel %vm704, %v2122, 0
      %v2149 = vsel %vm704, %v2123, 0
      %v2152 = vsel %vm704, %v2124, 0
      %v2155 = vand.u32 %v2134, %v827
      %2157 = vmatprep.subr.bf16.mxu0 0
      %2158 = vmatpush1.bf16.msra.mxu0 0
      %2159 = vmatprep.subr.bf16.mxu0 0
      %2160 = vmatpush1.bf16.msra.mxu0 0
      %2161 = vmatprep.subr.bf16.mxu0 0
      %2162 = vmatpush1.bf16.msra.mxu0 0
      %2163 = vmatprep.subr.bf16.mxu0 0
      %2164 = vmatpush1.bf16.msra.mxu0 %v2155
      %2165 = vmatprep.subr.bf16.mxu0 0
      %2166 = vmatpush1.bf16.msra.mxu0 %v2132
      %2167 = vmatprep.subr.bf16.mxu0 0
      %2168 = vmatpush1.bf16.msra.mxu0 %v2130
      %2169 = vmatprep.subr.bf16.mxu0 0
      %2170 = vmatpush1.bf16.msra.mxu0 %v2128
      %2171 = vmatprep.subr.bf16.mxu0 0
      %2172 = vmatpush1.bf16.msra.mxu0 %v2126
      %2173 = vmatprep.subr.bf16.mxu0 0
      %2174 = vmatpush2.bf16.msra.mxu0 0
      %2175 = vmatprep.subr.bf16.mxu0 0
      %2176 = vmatpush2.bf16.msra.mxu0 0
      %2177 = vmatprep.subr.bf16.mxu0 0
      %2178 = vmatpush2.bf16.msra.mxu0 0
      %2179 = vmatprep.subr.bf16.mxu0 0
      %2180 = vmatpush2.bf16.msra.mxu0 0
      %2181 = vmatprep.subr.bf16.mxu0 0
      %2182 = vmatpush2.bf16.msra.mxu0 0
      %2183 = vmatprep.subr.bf16.mxu0 0
      %2184 = vmatpush2.bf16.msra.mxu0 0
      %2185 = vmatprep.subr.bf16.mxu0 0
      %2186 = vmatpush2.bf16.msra.mxu0 0
      %2187 = vmatprep.subr.bf16.mxu0 0
      %2188 = vmatpush2.bf16.msra.mxu0 0
      %2189 = vmatprep.mubr.bf16.mxu0 0
      %2190 = vmatmul.mubr.bf16.gmra.mxu0 %v2140
      %v2191 = vpop.f32.mrf.mxu0
      %v2192 = vadd.f32 0.0, %v2191
      %v2193 = vpop.f32.mrf.mxu0
      %v2194 = vpop.f32.mrf.mxu0
      %v2195 = vadd.f32 0.0, %v2194
      %v2196 = vpop.f32.mrf.mxu0
      %2197 = vmatprep.mubr.bf16.mxu0 0
      %2198 = vmatmul.mubr.bf16.gmra.mxu0 %v2143
      %v2199 = vpop.f32.mrf.mxu0
      %v2200 = vadd.f32 0.0, %v2199
      %v2201 = vpop.f32.mrf.mxu0
      %v2202 = vpop.f32.mrf.mxu0
      %v2203 = vadd.f32 0.0, %v2202
      %v2204 = vpop.f32.mrf.mxu0
      %2205 = vmatprep.mubr.bf16.mxu0 0
      %2206 = vmatmul.mubr.bf16.gmra.mxu0 %v2146
      %v2207 = vpop.f32.mrf.mxu0
      %v2208 = vadd.f32 0.0, %v2207
      %v2209 = vpop.f32.mrf.mxu0
      %v2210 = vpop.f32.mrf.mxu0
      %v2211 = vadd.f32 0.0, %v2210
      %v2212 = vpop.f32.mrf.mxu0
      %2213 = vmatprep.mubr.bf16.mxu0 0
      %2214 = vmatmul.mubr.bf16.gmra.mxu0 %v2149
      %v2215 = vpop.f32.mrf.mxu0
      %v2216 = vadd.f32 0.0, %v2215
      %v2217 = vpop.f32.mrf.mxu0
      %v2218 = vpop.f32.mrf.mxu0
      %v2219 = vadd.f32 0.0, %v2218
      %v2220 = vpop.f32.mrf.mxu0
      %2221 = vmatprep.mubr.bf16.mxu0 0
      %2222 = vmatmul.mubr.bf16.gmra.mxu0 %v2152
      %v2223 = vpop.f32.mrf.mxu0
      %v2224 = vadd.f32 0.0, %v2223
      %v2225 = vpop.f32.mrf.mxu0
      %v2226 = vpop.f32.mrf.mxu0
      %v2227 = vpop.f32.mrf.mxu0
      %2228 = vdwg.mxu0
      %v2229 = vpack.c.bf16 %v2195, %v2192
      %v2230 = vpack.c.bf16 %v2203, %v2200
      %v2231 = vpack.c.bf16 %v2211, %v2208
      %v2232 = vpack.c.bf16 %v2219, %v2216
      %v2233 = vpack.c.bf16 %v2224, %v2224
      %v2238 = vunpack.c.l.b16 %v597
      %v2239 = vunpack.c.l.b16 %v598
      %v2240 = vunpack.c.l.b16 %v599
      %v2241 = vunpack.c.l.b16 %v600
      %v2242 = vpack.c.b16 %v2239, %v2238
      %v2243 = vpack.c.b16 %v2241, %v2240
      %v2247 = vsel %vm601, %v2229, 0
      %v2250 = vsel %vm601, %v2230, 0
      %v2253 = vsel %vm601, %v2231, 0
      %v2256 = vsel %vm601, %v2232, 0
      %v2259 = vsel %vm601, %v2233, 0
      %2261 = vmatprep.subr.bf16.mxu0 0
      %2262 = vmatpush1.bf16.msra.mxu0 0
      %2263 = vmatprep.subr.bf16.mxu0 0
      %2264 = vmatpush1.bf16.msra.mxu0 0
      %2265 = vmatprep.subr.bf16.mxu0 0
      %2266 = vmatpush1.bf16.msra.mxu0 0
      %2267 = vmatprep.subr.bf16.mxu0 0
      %2268 = vmatpush1.bf16.msra.mxu0 0
      %2269 = vmatprep.subr.bf16.mxu0 0
      %2270 = vmatpush1.bf16.msra.mxu0 0
      %2271 = vmatprep.subr.bf16.mxu0 0
      %2272 = vmatpush1.bf16.msra.mxu0 0
      %2273 = vmatprep.subr.bf16.mxu0 0
      %2274 = vmatpush1.bf16.msra.mxu0 %v2243
      %2275 = vmatprep.subr.bf16.mxu0 0
      %2276 = vmatpush1.bf16.msra.mxu0 %v2242
      %2277 = vmatprep.subr.bf16.mxu0 0
      %2278 = vmatpush2.bf16.msra.mxu0 0
      %2279 = vmatprep.subr.bf16.mxu0 0
      %2280 = vmatpush2.bf16.msra.mxu0 0
      %2281 = vmatprep.subr.bf16.mxu0 0
      %2282 = vmatpush2.bf16.msra.mxu0 0
      %2283 = vmatprep.subr.bf16.mxu0 0
      %2284 = vmatpush2.bf16.msra.mxu0 0
      %2285 = vmatprep.subr.bf16.mxu0 0
      %2286 = vmatpush2.bf16.msra.mxu0 0
      %2287 = vmatprep.subr.bf16.mxu0 0
      %2288 = vmatpush2.bf16.msra.mxu0 0
      %2289 = vmatprep.subr.bf16.mxu0 0
      %2290 = vmatpush2.bf16.msra.mxu0 0
      %2291 = vmatprep.subr.bf16.mxu0 0
      %2292 = vmatpush2.bf16.msra.mxu0 0
      %2293 = vmatprep.mubr.bf16.mxu0 0
      %2294 = vmatmul.mubr.bf16.gmra.mxu0 %v2247
      %v2295 = vpop.f32.mrf.mxu0
      %v2296 = vadd.f32 0.0, %v2295
      %v2297 = vpop.f32.mrf.mxu0
      %v2298 = vpop.f32.mrf.mxu0
      %v2299 = vadd.f32 0.0, %v2298
      %v2300 = vpop.f32.mrf.mxu0
      %2301 = vmatprep.mubr.bf16.mxu0 0
      %2302 = vmatmul.mubr.bf16.gmra.mxu0 %v2250
      %v2303 = vpop.f32.mrf.mxu0
      %v2304 = vadd.f32 0.0, %v2303
      %v2305 = vpop.f32.mrf.mxu0
      %v2306 = vpop.f32.mrf.mxu0
      %v2307 = vadd.f32 0.0, %v2306
      %v2308 = vpop.f32.mrf.mxu0
      %2309 = vmatprep.mubr.bf16.mxu0 0
      %2310 = vmatmul.mubr.bf16.gmra.mxu0 %v2253
      %v2311 = vpop.f32.mrf.mxu0
      %v2312 = vadd.f32 0.0, %v2311
      %v2313 = vpop.f32.mrf.mxu0
      %v2314 = vpop.f32.mrf.mxu0
      %v2315 = vadd.f32 0.0, %v2314
      %v2316 = vpop.f32.mrf.mxu0
      %2317 = vmatprep.mubr.bf16.mxu0 0
      %2318 = vmatmul.mubr.bf16.gmra.mxu0 %v2256
      %v2319 = vpop.f32.mrf.mxu0
      %v2320 = vadd.f32 0.0, %v2319
      %v2321 = vpop.f32.mrf.mxu0
      %v2322 = vpop.f32.mrf.mxu0
      %v2323 = vadd.f32 0.0, %v2322
      %v2324 = vpop.f32.mrf.mxu0
      %2325 = vmatprep.mubr.bf16.mxu0 0
      %2326 = vmatmul.mubr.bf16.gmra.mxu0 %v2259
      %v2327 = vpop.f32.mrf.mxu0
      %v2328 = vadd.f32 0.0, %v2327
      %v2329 = vpop.f32.mrf.mxu0
      %v2330 = vpop.f32.mrf.mxu0
      %v2331 = vpop.f32.mrf.mxu0
      %2332 = vdwg.mxu0
      %v2333 = vadd.f32 %v1890, %v2296
      %v2334 = vadd.f32 %v1891, %v2299
      %v2335 = vadd.f32 %v1892, %v2304
      %v2336 = vadd.f32 %v1893, %v2307
      %v2337 = vadd.f32 %v1894, %v2312
      %v2338 = vadd.f32 %v1895, %v2315
      %v2339 = vadd.f32 %v1896, %v2320
      %v2340 = vadd.f32 %v1897, %v2323
      %v2341 = vadd.f32 %v1898, %v2328
      %v2342 = vld [vmem:[%s4] sm:$0x1]
      %v2344 = vlaneseq
      %v2345 = vshrl.u32 %v2344, 7
      %v2346 = vsub.s32 0, %v2345
      %v2347 = vrot.slane %v2342, %v2346
      %v2349 = vadd.f32 %v2333, %v2347
      %v2350 = vadd.f32 %v2334, %v2347
      %v2351 = vadd.f32 %v2335, %v2347
      %v2352 = vadd.f32 %v2336, %v2347
      %v2353 = vadd.f32 %v2337, %v2347
      %v2354 = vadd.f32 %v2338, %v2347
      %v2355 = vadd.f32 %v2339, %v2347
      %v2356 = vadd.f32 %v2340, %v2347
      %v2357 = vadd.f32 %v2341, %v2347
      %2358 = vst [vmem:[%s224] sm:$0xff] %v2349
      %2359 = vst [vmem:[%s224 + $0x8] sm:$0xff] %v2350
      %2360 = vst [vmem:[%s224 + $0x10] sm:$0xff] %v2351
      %2361 = vst [vmem:[%s224 + $0x18] sm:$0xff] %v2352
      %2362 = vst [vmem:[%s224 + $0x20] sm:$0xff] %v2353
      %2363 = vst [vmem:[%s224 + $0x28] sm:$0xff] %v2354
      %2364 = vst [vmem:[%s224 + $0x30] sm:$0xff] %v2355
      %2365 = vst [vmem:[%s224 + $0x38] sm:$0xff] %v2356
      %2366 = vst [vmem:[%s224 + $0x40] sm:$0x1] %v2357
      %p2367 = scmp.lt.s32.totalorder %s16, 1
      %s2368 = scalar_select %p2367, %s16, 1
      %s2369 = smul.addr %s2368, 9
      %s2370 = smul.addr %s2369, 8
      %s2371 = scalar_lea.vmem %s5, %s2370
      // Predicated region
      $region41: #{tpu_custom_call.1} parent=39 // pred_check
        %p2372 = pneg %p144
      $region42: #{tpu_custom_call.1} parent=39 // pred_check_branch
        %2374 = sbr.rel (%p2372) target = $region44
      $region43: #{tpu_custom_call.1} parent=39 // pred_region
        _
      $region44: #{tpu_custom_call.1} parent=39 // pred_fallthru
        _
    $region40: #{tpu_custom_call.1} parent=5 // pred_fallthru
      _
    %p2375 = scmp.le.s32.totalorder 2, %s11
    // Predicated region
    $region45: #{tpu_custom_call.1} parent=5 // pred_check
      %p2376 = pneg %p2375
    $region46: #{tpu_custom_call.1} parent=5 // pred_check_branch
      %2378 = sbr.rel (%p2376) target = $region48
    $region47: #{tpu_custom_call.1} parent=5 // pred_region
      %s2379 = ssub.s32 %s11, 2
      // Predicated region
      $region49: #{tpu_custom_call.1} parent=47 // pred_check
        %p2380 = pneg %p150
      $region50: #{tpu_custom_call.1} parent=47 // pred_check_branch
        %2382 = sbr.rel (%p2380) target = $region52
      $region51: #{tpu_custom_call.1} parent=47 // pred_region
        %p2383 = scmp.lt.s32.totalorder %s17, 1
        %s2384 = scalar_select %p2383, %s17, 1
        %s2385 = smul.addr %s2384, 9
        %s2386 = smul.addr %s2385, 8
        %s2387 = scalar_lea.vmem %s5, %s2386
      $region52: #{tpu_custom_call.1} parent=47 // pred_fallthru
        _
    $region48: #{tpu_custom_call.1} parent=5 // pred_fallthru
      _
  $region6: #{tpu_custom_call.1} parent=0 // loop_footer
    %s15 = sadd.s32 1, %s11
  $region7: #{tpu_custom_call.1} parent=0 // loop_footer_branch
    %10 = sbr.rel target = $region3
  $region8: #{tpu_custom_call.1} parent=0 // loop_exit
    _

</llo_original>
